<compile_context>
chip_gen: v7x
topology: tpu7x:2x2x1
jax: 0.10.0
libtpu: 0.0.40
codegen_flags: <defaults>
</compile_context>

<pallas_src>
import jax
import jax.numpy as jnp
from jax.experimental import pallas as pl
from jax.experimental.pallas import tpu as pltpu

MATMUL_DTYPE = jnp.bfloat16     # MXU operand dtype (accumulation stays f32)
KH = KW = 5                     # common 5x5 support for every conv branch


def _rup8(n):
    return ((n + 7) // 8) * 8


# ----------------------------------------------------------------------------
# Fused forward kernel (one grid step == one batch sample)
# ----------------------------------------------------------------------------
def _make_forward_kernel(H, W):
    HW = H * W
    ph, pw = KH // 2, KW // 2
    # flat-index shift of tap (kh, kw): pixel (h, w) reads (h+kh-ph, w+kw-pw)
    shifts = [(kh - ph) * W + (kw - pw) for kh in range(KH) for kw in range(KW)]

    def kernel(*refs):
        # refs = x, tap_mask, stem_w, stem_mask, (cell_w, cell_mask)*L,
        #        fc_w, fc_b, out
        x_ref, tap_ref, stem_w_ref, stem_m_ref = refs[0], refs[1], refs[2], refs[3]
        fc_w_ref, fc_b_ref, out_ref = refs[-3], refs[-2], refs[-1]
        cell_refs = refs[4:-3]

        taps = tap_ref[...]                                   # (KK, 1, HW) f32

        def conv(act, w_ref):
            """'same' conv of channels-major act (Cin, HW) against packed
            weights (Cout_tot, KK*Cin): im2col via XLU lane rolls + validity
            masks, then ONE MXU matmul -> lane-dense (Cout_tot, HW) f32."""
            blocks = []
            for t, s in enumerate(shifts):
                sh = (-s) % HW
                rolled = act if sh == 0 else pltpu.roll(act, shift=sh, axis=1)
                blocks.append(rolled * taps[t])               # mask == zero pad
            patches = jnp.concatenate(blocks, axis=0)         # (KK*Cin, HW)
            return jnp.dot(w_ref[...], patches.astype(MATMUL_DTYPE),
                           preferred_element_type=jnp.float32)

        # ---- stem: VariableConv(3 -> 3F) + ReLU + raw-alphas channel mask ----
        act = x_ref[0]                                        # (Cin0p, HW)
        act = jnp.maximum(conv(act, stem_w_ref), 0.0) * stem_m_ref[...]

        # ---- cells: one fused MixedOp matmul per cell (branches on Cout),
        #      ReLU, per-branch alpha*channel-mask scale, branch sum ----
        for c in range(len(cell_refs) // 2):
            w_ref, m_ref = cell_refs[2 * c], cell_refs[2 * c + 1]
            z = jnp.maximum(conv(act, w_ref), 0.0) * m_ref[...]   # (3*Fp, HW)
            f = z.shape[0] // 3
            act = z[0:f, :] + z[f:2 * f, :] + z[2 * f:3 * f, :]   # (Fp, HW)

        # ---- AdaptiveAvgPool2d(1) + Linear fused epilogue (lane-dense) ----
        proj = jnp.dot(fc_w_ref[...], act,
                       preferred_element_type=jnp.float32)        # (N, HW)
        logits = jnp.mean(proj, axis=1, keepdims=True) + fc_b_ref[...]  # (N, 1)
        out_ref[...] = logits.reshape(1, *logits.shape)           # (1, N, 1)

    return kernel


# ----------------------------------------------------------------------------
# Wrapper-side packing helpers (glue)
# ----------------------------------------------------------------------------
def _pack_conv_weight(w_hwio, cin_pad, cout_pad):
    """HWIO conv weight -> (cout_pad, KH*KW*cin_pad) matmul matrix; spatial
    support zero-padded to 5x5 ('same' equivalence), channels padded to x8."""
    kh, kw, cin, cout = w_hwio.shape
    ph, pw = (KH - kh) // 2, (KW - kw) // 2
    wp = jnp.pad(w_hwio, ((ph, ph), (pw, pw),
                          (0, cin_pad - cin), (0, cout_pad - cout)))
    return jnp.transpose(wp, (3, 0, 1, 2)).reshape(cout_pad, KH * KW * cin_pad)


def _tap_validity_mask(H, W):
    """(KH*KW, 1, H*W) 0/1 mask: does tap (kh, kw) stay inside the image."""
    h = jnp.arange(H * W) // W
    w = jnp.arange(H * W) % W
    rows = []
    for kh in range(KH):
        for kw in range(KW):
            dh, dw = kh - KH // 2, kw - KW // 2
            rows.append((h + dh >= 0) & (h + dh < H) &
                        (w + dw >= 0) & (w + dw < W))
    return jnp.stack(rows, axis=0).astype(jnp.float32).reshape(KH * KW, 1, H * W)


# ----------------------------------------------------------------------------
# Network parameters / forward (mirrors cnn/model_search.py::Network)
# ----------------------------------------------------------------------------
def make_channel_masks(out_channels, channel_scale_factor):
    rows = out_channels // channel_scale_factor
    idx = jnp.arange(out_channels)
    thresh = channel_scale_factor * (jnp.arange(rows) + 1)
    # row i: first channel_scale_factor*(i+1) entries are 1
    return (idx[None, :] < thresh[:, None]).astype(jnp.float32)   # (rows, Cout)


def init_network_params(key, init_filters=4, num_classes=10, layers=2,
                        stem_multiplier=3):
    keys = list(jax.random.split(key, 2 + 3 * layers + 3))
    ki = iter(keys)
    params = {}
    no_filters = stem_multiplier * init_filters
    # stem: VariableConv(3, 3*F, (3,3), csf=stem_multiplier)
    params['stem_w'] = 0.1 * jax.random.normal(
        next(ki), (3, 3, 3, no_filters), jnp.float32)
    params['stem_channel_masks'] = make_channel_masks(no_filters, stem_multiplier)

    cells = []
    no_channels, nf = no_filters, init_filters
    for i in range(layers):
        if i in [layers // 3, 2 * layers // 3]:
            nf *= 1
        csf = int(nf // init_filters)
        ws = [0.1 * jax.random.normal(next(ki), (k, k, no_channels, nf), jnp.float32)
              for k in (1, 3, 5)]                    # MixedOp: 1x1, 3x3, 5x5
        cells.append({'w': ws, 'channel_masks': make_channel_masks(nf, csf)})
        no_channels = nf
    params['cells'] = cells

    params['fc_w'] = 0.1 * jax.random.normal(
        next(ki), (num_classes, no_channels), jnp.float32)
    params['fc_b'] = jnp.zeros((num_classes,), jnp.float32)
    # architecture parameters
    params['alphas_normal'] = 0.001 * jax.random.normal(next(ki), (1, 3), jnp.float32)
    params['alphas_channels'] = 0.001 * jax.random.normal(
        next(ki), (init_filters,), jnp.float32)
    return params


def network_forward(params, x_nchw, gumbel_key, tau=1.0):
    B, cin0, H, W = x_nchw.shape
    HW = H * W
    cin0_p = _rup8(cin0)

    # channels-major, channel-padded per-sample layout: (B, cin0_p, H*W)
    x_t = jnp.pad(x_nchw.reshape(B, cin0, HW).astype(jnp.float32),
                  ((0, 0), (0, cin0_p - cin0), (0, 0)))
    tap_mask = _tap_validity_mask(H, W)

    # ---- stem (raw alphas_channels mask, applied after ReLU) ----
    c_stem = params['stem_w'].shape[3]
    c_stem_p = _rup8(c_stem)
    stem_w = _pack_conv_weight(params['stem_w'], cin0_p, c_stem_p).astype(MATMUL_DTYPE)
    stem_mask = params['stem_channel_masks'].T @ params['alphas_channels']    # (3F,)
    stem_mask = jnp.pad(stem_mask, (0, c_stem_p - c_stem)).reshape(-1, 1)
    stem_mask = stem_mask.astype(jnp.float32)

    alphas_normal = jax.nn.softmax(params['alphas_normal'], axis=-1)          # (1, 3)

    # ---- cells: fold MixedOp into one packed weight / row-scale per cell ----
    cell_args = []
    cin_p = c_stem_p
    for cell in params['cells']:
        # F.gumbel_softmax(alphas_channels, tau, hard=False): fresh noise per cell
        gumbel_key, sub = jax.random.split(gumbel_key)
        g = jax.random.gumbel(sub, params['alphas_channels'].shape, jnp.float32)
        a_ch = jax.nn.softmax((params['alphas_channels'] + g) / tau, axis=-1)
        cmask = cell['channel_masks'].T @ a_ch                                # (F,)

        f = cell['w'][0].shape[3]
        f_p = _rup8(f)
        w_comb = jnp.concatenate(
            [_pack_conv_weight(w, cin_p, f_p) for w in cell['w']],
            axis=0).astype(MATMUL_DTYPE)                                      # (3*f_p, 25*cin_p)
        m_comb = jnp.concatenate(
            [jnp.pad(alphas_normal[0, i] * cmask, (0, f_p - f)) for i in range(3)],
            axis=0).reshape(-1, 1).astype(jnp.float32)                        # (3*f_p, 1)
        cell_args.extend([w_comb, m_comb])
        cin_p = f_p

    # ---- classifier ----
    num_classes, no_channels = params['fc_w'].shape
    fc_w = jnp.pad(params['fc_w'],
                   ((0, 0), (0, cin_p - no_channels))).astype(jnp.float32)    # (N, cin_p)
    fc_b = params['fc_b'].reshape(num_classes, 1).astype(jnp.float32)         # (N, 1)

    inputs = [x_t, tap_mask, stem_w, stem_mask] + cell_args + [fc_w, fc_b]
    in_specs = [pl.BlockSpec((1, cin0_p, HW), lambda b: (b, 0, 0)),
                pl.BlockSpec(tap_mask.shape, lambda b: (0, 0, 0))]
    in_specs += [pl.BlockSpec(a.shape, lambda b: (0, 0)) for a in inputs[2:]]

    out = pl.pallas_call(
        _make_forward_kernel(H, W),
        grid=(B,),                              # one sample per grid step
        out_shape=jax.ShapeDtypeStruct((B, num_classes, 1), jnp.float32),
        in_specs=in_specs,
        out_specs=pl.BlockSpec((1, num_classes, 1), lambda b: (b, 0, 0)),
        compiler_params=pltpu.CompilerParams(
            dimension_semantics=("parallel",)),  # v7x: both TCs split the batch
    )(*inputs)
    return out[:, :, 0]                          # (B, num_classes)


# ----------------------------------------------------------------------------
if __name__ == "__main__":
    key = jax.random.PRNGKey(0)
    k_in, k_param, k_gumbel = jax.random.split(key, 3)

    init_filters, num_classes, layers = 4, 10, 2
    params = init_network_params(k_param, init_filters=init_filters,
                                 num_classes=num_classes, layers=layers,
                                 stem_multiplier=3)

    # PyTorch-convention NCHW input: (batch=2, channels=3, 16, 16)
    x = jax.random.normal(k_in, (2, 3, 16, 16), jnp.float32)

    fwd = jax.jit(network_forward)
    logits = jax.block_until_ready(fwd(params, x, k_gumbel))
    assert logits.shape == (2, num_classes)
    assert bool(jnp.all(jnp.isfinite(logits)))
    print("KERNEL_OK")
</pallas_src>

<mosaic_0001>
module attributes {stable_mosaic.version = 11 : i64} {
  func.func @kernel(%arg0: i32, %arg1: memref<1x8x256xf32, #tpu.memory_space<vmem>>, %arg2: memref<25x1x256xf32, #tpu.memory_space<vmem>>, %arg3: memref<16x200xbf16, #tpu.memory_space<vmem>>, %arg4: memref<16x1xf32, #tpu.memory_space<vmem>>, %arg5: memref<24x400xbf16, #tpu.memory_space<vmem>>, %arg6: memref<24x1xf32, #tpu.memory_space<vmem>>, %arg7: memref<24x200xbf16, #tpu.memory_space<vmem>>, %arg8: memref<24x1xf32, #tpu.memory_space<vmem>>, %arg9: memref<10x8xf32, #tpu.memory_space<vmem>>, %arg10: memref<10x1xf32, #tpu.memory_space<vmem>>, %arg11: memref<1x10x1xf32, #tpu.memory_space<vmem>>) attributes {dimension_semantics = [#tpu.dimension_semantics<parallel>], iteration_bounds = array<i64: 2>, scalar_prefetch = 0 : i64, scratch_operands = 0 : i64, tpu.core_type = #tpu.core_type<tc>, window_params = [{transform_indices = @transform_0, window_bounds = array<i64: 1, 8, 256>}, {pipeline_mode = #tpu.pipeline_mode<synchronous>, transform_indices = @transform_1, window_bounds = array<i64: 25, 1, 256>}, {pipeline_mode = #tpu.pipeline_mode<synchronous>, transform_indices = @transform_2, window_bounds = array<i64: 16, 200>}, {pipeline_mode = #tpu.pipeline_mode<synchronous>, transform_indices = @transform_3, window_bounds = array<i64: 16, 1>}, {pipeline_mode = #tpu.pipeline_mode<synchronous>, transform_indices = @transform_4, window_bounds = array<i64: 24, 400>}, {pipeline_mode = #tpu.pipeline_mode<synchronous>, transform_indices = @transform_5, window_bounds = array<i64: 24, 1>}, {pipeline_mode = #tpu.pipeline_mode<synchronous>, transform_indices = @transform_6, window_bounds = array<i64: 24, 200>}, {pipeline_mode = #tpu.pipeline_mode<synchronous>, transform_indices = @transform_7, window_bounds = array<i64: 24, 1>}, {pipeline_mode = #tpu.pipeline_mode<synchronous>, transform_indices = @transform_8, window_bounds = array<i64: 10, 8>}, {pipeline_mode = #tpu.pipeline_mode<synchronous>, transform_indices = @transform_9, window_bounds = array<i64: 10, 1>}, {transform_indices = @transform_10, window_bounds = array<i64: 1, 10, 1>}]} {
    %c0 = arith.constant 0 : index
    %c0_0 = arith.constant 0 : index
    %c0_1 = arith.constant 0 : index
    %0 = vector.load %arg2[%c0, %c0_0, %c0_1] : memref<25x1x256xf32, #tpu.memory_space<vmem>>, vector<25x1x256xf32>
    %c0_2 = arith.constant 0 : index
    %c0_3 = arith.constant 0 : index
    %c0_4 = arith.constant 0 : index
    %1 = vector.load %arg1[%c0_2, %c0_3, %c0_4] : memref<1x8x256xf32, #tpu.memory_space<vmem>>, vector<1x8x256xf32>
    %2 = vector.shape_cast %1 : vector<1x8x256xf32> to vector<8x256xf32>
    %c34_i32 = arith.constant 34 : i32
    %3 = tpu.dynamic_rotate %2 by %c34_i32 dim 1 : vector<8x256xf32>, i32 -> vector<8x256xf32>
    %4 = vector.extract_strided_slice %0 {offsets = [0, 0, 0], sizes = [1, 1, 256], strides = [1, 1, 1]} : vector<25x1x256xf32> to vector<1x1x256xf32>
    %5 = vector.shape_cast %4 : vector<1x1x256xf32> to vector<1x256xf32>
    %6 = vector.broadcast %5 : vector<1x256xf32> to vector<8x256xf32>
    %7 = arith.mulf %3, %6 : vector<8x256xf32>
    %c33_i32 = arith.constant 33 : i32
    %8 = tpu.dynamic_rotate %2 by %c33_i32 dim 1 : vector<8x256xf32>, i32 -> vector<8x256xf32>
    %9 = vector.extract_strided_slice %0 {offsets = [1, 0, 0], sizes = [1, 1, 256], strides = [1, 1, 1]} : vector<25x1x256xf32> to vector<1x1x256xf32>
    %10 = vector.shape_cast %9 : vector<1x1x256xf32> to vector<1x256xf32>
    %11 = vector.broadcast %10 : vector<1x256xf32> to vector<8x256xf32>
    %12 = arith.mulf %8, %11 : vector<8x256xf32>
    %c32_i32 = arith.constant 32 : i32
    %13 = tpu.dynamic_rotate %2 by %c32_i32 dim 1 : vector<8x256xf32>, i32 -> vector<8x256xf32>
    %14 = vector.extract_strided_slice %0 {offsets = [2, 0, 0], sizes = [1, 1, 256], strides = [1, 1, 1]} : vector<25x1x256xf32> to vector<1x1x256xf32>
    %15 = vector.shape_cast %14 : vector<1x1x256xf32> to vector<1x256xf32>
    %16 = vector.broadcast %15 : vector<1x256xf32> to vector<8x256xf32>
    %17 = arith.mulf %13, %16 : vector<8x256xf32>
    %c31_i32 = arith.constant 31 : i32
    %18 = tpu.dynamic_rotate %2 by %c31_i32 dim 1 : vector<8x256xf32>, i32 -> vector<8x256xf32>
    %19 = vector.extract_strided_slice %0 {offsets = [3, 0, 0], sizes = [1, 1, 256], strides = [1, 1, 1]} : vector<25x1x256xf32> to vector<1x1x256xf32>
    %20 = vector.shape_cast %19 : vector<1x1x256xf32> to vector<1x256xf32>
    %21 = vector.broadcast %20 : vector<1x256xf32> to vector<8x256xf32>
    %22 = arith.mulf %18, %21 : vector<8x256xf32>
    %c30_i32 = arith.constant 30 : i32
    %23 = tpu.dynamic_rotate %2 by %c30_i32 dim 1 : vector<8x256xf32>, i32 -> vector<8x256xf32>
    %24 = vector.extract_strided_slice %0 {offsets = [4, 0, 0], sizes = [1, 1, 256], strides = [1, 1, 1]} : vector<25x1x256xf32> to vector<1x1x256xf32>
    %25 = vector.shape_cast %24 : vector<1x1x256xf32> to vector<1x256xf32>
    %26 = vector.broadcast %25 : vector<1x256xf32> to vector<8x256xf32>
    %27 = arith.mulf %23, %26 : vector<8x256xf32>
    %c18_i32 = arith.constant 18 : i32
    %28 = tpu.dynamic_rotate %2 by %c18_i32 dim 1 : vector<8x256xf32>, i32 -> vector<8x256xf32>
    %29 = vector.extract_strided_slice %0 {offsets = [5, 0, 0], sizes = [1, 1, 256], strides = [1, 1, 1]} : vector<25x1x256xf32> to vector<1x1x256xf32>
    %30 = vector.shape_cast %29 : vector<1x1x256xf32> to vector<1x256xf32>
    %31 = vector.broadcast %30 : vector<1x256xf32> to vector<8x256xf32>
    %32 = arith.mulf %28, %31 : vector<8x256xf32>
    %c17_i32 = arith.constant 17 : i32
    %33 = tpu.dynamic_rotate %2 by %c17_i32 dim 1 : vector<8x256xf32>, i32 -> vector<8x256xf32>
    %34 = vector.extract_strided_slice %0 {offsets = [6, 0, 0], sizes = [1, 1, 256], strides = [1, 1, 1]} : vector<25x1x256xf32> to vector<1x1x256xf32>
    %35 = vector.shape_cast %34 : vector<1x1x256xf32> to vector<1x256xf32>
    %36 = vector.broadcast %35 : vector<1x256xf32> to vector<8x256xf32>
    %37 = arith.mulf %33, %36 : vector<8x256xf32>
    %c16_i32 = arith.constant 16 : i32
    %38 = tpu.dynamic_rotate %2 by %c16_i32 dim 1 : vector<8x256xf32>, i32 -> vector<8x256xf32>
    %39 = vector.extract_strided_slice %0 {offsets = [7, 0, 0], sizes = [1, 1, 256], strides = [1, 1, 1]} : vector<25x1x256xf32> to vector<1x1x256xf32>
    %40 = vector.shape_cast %39 : vector<1x1x256xf32> to vector<1x256xf32>
    %41 = vector.broadcast %40 : vector<1x256xf32> to vector<8x256xf32>
    %42 = arith.mulf %38, %41 : vector<8x256xf32>
    %c15_i32 = arith.constant 15 : i32
    %43 = tpu.dynamic_rotate %2 by %c15_i32 dim 1 : vector<8x256xf32>, i32 -> vector<8x256xf32>
    %44 = vector.extract_strided_slice %0 {offsets = [8, 0, 0], sizes = [1, 1, 256], strides = [1, 1, 1]} : vector<25x1x256xf32> to vector<1x1x256xf32>
    %45 = vector.shape_cast %44 : vector<1x1x256xf32> to vector<1x256xf32>
    %46 = vector.broadcast %45 : vector<1x256xf32> to vector<8x256xf32>
    %47 = arith.mulf %43, %46 : vector<8x256xf32>
    %c14_i32 = arith.constant 14 : i32
    %48 = tpu.dynamic_rotate %2 by %c14_i32 dim 1 : vector<8x256xf32>, i32 -> vector<8x256xf32>
    %49 = vector.extract_strided_slice %0 {offsets = [9, 0, 0], sizes = [1, 1, 256], strides = [1, 1, 1]} : vector<25x1x256xf32> to vector<1x1x256xf32>
    %50 = vector.shape_cast %49 : vector<1x1x256xf32> to vector<1x256xf32>
    %51 = vector.broadcast %50 : vector<1x256xf32> to vector<8x256xf32>
    %52 = arith.mulf %48, %51 : vector<8x256xf32>
    %c2_i32 = arith.constant 2 : i32
    %53 = tpu.dynamic_rotate %2 by %c2_i32 dim 1 : vector<8x256xf32>, i32 -> vector<8x256xf32>
    %54 = vector.extract_strided_slice %0 {offsets = [10, 0, 0], sizes = [1, 1, 256], strides = [1, 1, 1]} : vector<25x1x256xf32> to vector<1x1x256xf32>
    %55 = vector.shape_cast %54 : vector<1x1x256xf32> to vector<1x256xf32>
    %56 = vector.broadcast %55 : vector<1x256xf32> to vector<8x256xf32>
    %57 = arith.mulf %53, %56 : vector<8x256xf32>
    %c1_i32 = arith.constant 1 : i32
    %58 = tpu.dynamic_rotate %2 by %c1_i32 dim 1 : vector<8x256xf32>, i32 -> vector<8x256xf32>
    %59 = vector.extract_strided_slice %0 {offsets = [11, 0, 0], sizes = [1, 1, 256], strides = [1, 1, 1]} : vector<25x1x256xf32> to vector<1x1x256xf32>
    %60 = vector.shape_cast %59 : vector<1x1x256xf32> to vector<1x256xf32>
    %61 = vector.broadcast %60 : vector<1x256xf32> to vector<8x256xf32>
    %62 = arith.mulf %58, %61 : vector<8x256xf32>
    %63 = vector.extract_strided_slice %0 {offsets = [12, 0, 0], sizes = [1, 1, 256], strides = [1, 1, 1]} : vector<25x1x256xf32> to vector<1x1x256xf32>
    %64 = vector.shape_cast %63 : vector<1x1x256xf32> to vector<1x256xf32>
    %65 = vector.broadcast %64 : vector<1x256xf32> to vector<8x256xf32>
    %66 = arith.mulf %2, %65 : vector<8x256xf32>
    %c255_i32 = arith.constant 255 : i32
    %67 = tpu.dynamic_rotate %2 by %c255_i32 dim 1 : vector<8x256xf32>, i32 -> vector<8x256xf32>
    %68 = vector.extract_strided_slice %0 {offsets = [13, 0, 0], sizes = [1, 1, 256], strides = [1, 1, 1]} : vector<25x1x256xf32> to vector<1x1x256xf32>
    %69 = vector.shape_cast %68 : vector<1x1x256xf32> to vector<1x256xf32>
    %70 = vector.broadcast %69 : vector<1x256xf32> to vector<8x256xf32>
    %71 = arith.mulf %67, %70 : vector<8x256xf32>
    %c254_i32 = arith.constant 254 : i32
    %72 = tpu.dynamic_rotate %2 by %c254_i32 dim 1 : vector<8x256xf32>, i32 -> vector<8x256xf32>
    %73 = vector.extract_strided_slice %0 {offsets = [14, 0, 0], sizes = [1, 1, 256], strides = [1, 1, 1]} : vector<25x1x256xf32> to vector<1x1x256xf32>
    %74 = vector.shape_cast %73 : vector<1x1x256xf32> to vector<1x256xf32>
    %75 = vector.broadcast %74 : vector<1x256xf32> to vector<8x256xf32>
    %76 = arith.mulf %72, %75 : vector<8x256xf32>
    %c242_i32 = arith.constant 242 : i32
    %77 = tpu.dynamic_rotate %2 by %c242_i32 dim 1 : vector<8x256xf32>, i32 -> vector<8x256xf32>
    %78 = vector.extract_strided_slice %0 {offsets = [15, 0, 0], sizes = [1, 1, 256], strides = [1, 1, 1]} : vector<25x1x256xf32> to vector<1x1x256xf32>
    %79 = vector.shape_cast %78 : vector<1x1x256xf32> to vector<1x256xf32>
    %80 = vector.broadcast %79 : vector<1x256xf32> to vector<8x256xf32>
    %81 = arith.mulf %77, %80 : vector<8x256xf32>
    %c241_i32 = arith.constant 241 : i32
    %82 = tpu.dynamic_rotate %2 by %c241_i32 dim 1 : vector<8x256xf32>, i32 -> vector<8x256xf32>
    %83 = vector.extract_strided_slice %0 {offsets = [16, 0, 0], sizes = [1, 1, 256], strides = [1, 1, 1]} : vector<25x1x256xf32> to vector<1x1x256xf32>
    %84 = vector.shape_cast %83 : vector<1x1x256xf32> to vector<1x256xf32>
    %85 = vector.broadcast %84 : vector<1x256xf32> to vector<8x256xf32>
    %86 = arith.mulf %82, %85 : vector<8x256xf32>
    %c240_i32 = arith.constant 240 : i32
    %87 = tpu.dynamic_rotate %2 by %c240_i32 dim 1 : vector<8x256xf32>, i32 -> vector<8x256xf32>
    %88 = vector.extract_strided_slice %0 {offsets = [17, 0, 0], sizes = [1, 1, 256], strides = [1, 1, 1]} : vector<25x1x256xf32> to vector<1x1x256xf32>
    %89 = vector.shape_cast %88 : vector<1x1x256xf32> to vector<1x256xf32>
    %90 = vector.broadcast %89 : vector<1x256xf32> to vector<8x256xf32>
    %91 = arith.mulf %87, %90 : vector<8x256xf32>
    %c239_i32 = arith.constant 239 : i32
    %92 = tpu.dynamic_rotate %2 by %c239_i32 dim 1 : vector<8x256xf32>, i32 -> vector<8x256xf32>
    %93 = vector.extract_strided_slice %0 {offsets = [18, 0, 0], sizes = [1, 1, 256], strides = [1, 1, 1]} : vector<25x1x256xf32> to vector<1x1x256xf32>
    %94 = vector.shape_cast %93 : vector<1x1x256xf32> to vector<1x256xf32>
    %95 = vector.broadcast %94 : vector<1x256xf32> to vector<8x256xf32>
    %96 = arith.mulf %92, %95 : vector<8x256xf32>
    %c238_i32 = arith.constant 238 : i32
    %97 = tpu.dynamic_rotate %2 by %c238_i32 dim 1 : vector<8x256xf32>, i32 -> vector<8x256xf32>
    %98 = vector.extract_strided_slice %0 {offsets = [19, 0, 0], sizes = [1, 1, 256], strides = [1, 1, 1]} : vector<25x1x256xf32> to vector<1x1x256xf32>
    %99 = vector.shape_cast %98 : vector<1x1x256xf32> to vector<1x256xf32>
    %100 = vector.broadcast %99 : vector<1x256xf32> to vector<8x256xf32>
    %101 = arith.mulf %97, %100 : vector<8x256xf32>
    %c226_i32 = arith.constant 226 : i32
    %102 = tpu.dynamic_rotate %2 by %c226_i32 dim 1 : vector<8x256xf32>, i32 -> vector<8x256xf32>
    %103 = vector.extract_strided_slice %0 {offsets = [20, 0, 0], sizes = [1, 1, 256], strides = [1, 1, 1]} : vector<25x1x256xf32> to vector<1x1x256xf32>
    %104 = vector.shape_cast %103 : vector<1x1x256xf32> to vector<1x256xf32>
    %105 = vector.broadcast %104 : vector<1x256xf32> to vector<8x256xf32>
    %106 = arith.mulf %102, %105 : vector<8x256xf32>
    %c225_i32 = arith.constant 225 : i32
    %107 = tpu.dynamic_rotate %2 by %c225_i32 dim 1 : vector<8x256xf32>, i32 -> vector<8x256xf32>
    %108 = vector.extract_strided_slice %0 {offsets = [21, 0, 0], sizes = [1, 1, 256], strides = [1, 1, 1]} : vector<25x1x256xf32> to vector<1x1x256xf32>
    %109 = vector.shape_cast %108 : vector<1x1x256xf32> to vector<1x256xf32>
    %110 = vector.broadcast %109 : vector<1x256xf32> to vector<8x256xf32>
    %111 = arith.mulf %107, %110 : vector<8x256xf32>
    %c224_i32 = arith.constant 224 : i32
    %112 = tpu.dynamic_rotate %2 by %c224_i32 dim 1 : vector<8x256xf32>, i32 -> vector<8x256xf32>
    %113 = vector.extract_strided_slice %0 {offsets = [22, 0, 0], sizes = [1, 1, 256], strides = [1, 1, 1]} : vector<25x1x256xf32> to vector<1x1x256xf32>
    %114 = vector.shape_cast %113 : vector<1x1x256xf32> to vector<1x256xf32>
    %115 = vector.broadcast %114 : vector<1x256xf32> to vector<8x256xf32>
    %116 = arith.mulf %112, %115 : vector<8x256xf32>
    %c223_i32 = arith.constant 223 : i32
    %117 = tpu.dynamic_rotate %2 by %c223_i32 dim 1 : vector<8x256xf32>, i32 -> vector<8x256xf32>
    %118 = vector.extract_strided_slice %0 {offsets = [23, 0, 0], sizes = [1, 1, 256], strides = [1, 1, 1]} : vector<25x1x256xf32> to vector<1x1x256xf32>
    %119 = vector.shape_cast %118 : vector<1x1x256xf32> to vector<1x256xf32>
    %120 = vector.broadcast %119 : vector<1x256xf32> to vector<8x256xf32>
    %121 = arith.mulf %117, %120 : vector<8x256xf32>
    %c222_i32 = arith.constant 222 : i32
    %122 = tpu.dynamic_rotate %2 by %c222_i32 dim 1 : vector<8x256xf32>, i32 -> vector<8x256xf32>
    %123 = vector.extract_strided_slice %0 {offsets = [24, 0, 0], sizes = [1, 1, 256], strides = [1, 1, 1]} : vector<25x1x256xf32> to vector<1x1x256xf32>
    %124 = vector.shape_cast %123 : vector<1x1x256xf32> to vector<1x256xf32>
    %125 = vector.broadcast %124 : vector<1x256xf32> to vector<8x256xf32>
    %126 = arith.mulf %122, %125 : vector<8x256xf32>
    %127 = tpu.concatenate %7, %12, %17, %22, %27, %32, %37, %42, %47, %52, %57, %62, %66, %71, %76, %81 in 0 : vector<8x256xf32>, vector<8x256xf32>, vector<8x256xf32>, vector<8x256xf32>, vector<8x256xf32>, vector<8x256xf32>, vector<8x256xf32>, vector<8x256xf32>, vector<8x256xf32>, vector<8x256xf32>, vector<8x256xf32>, vector<8x256xf32>, vector<8x256xf32>, vector<8x256xf32>, vector<8x256xf32>, vector<8x256xf32> -> vector<128x256xf32>
    %128 = tpu.concatenate %86, %91, %96, %101, %106, %111, %116, %121, %126 in 0 : vector<8x256xf32>, vector<8x256xf32>, vector<8x256xf32>, vector<8x256xf32>, vector<8x256xf32>, vector<8x256xf32>, vector<8x256xf32>, vector<8x256xf32>, vector<8x256xf32> -> vector<72x256xf32>
    %129 = tpu.concatenate %127, %128 in 0 : vector<128x256xf32>, vector<72x256xf32> -> vector<200x256xf32>
    %c0_5 = arith.constant 0 : index
    %c0_6 = arith.constant 0 : index
    %130 = vector.load %arg3[%c0_5, %c0_6] : memref<16x200xbf16, #tpu.memory_space<vmem>>, vector<16x200xbf16>
    %131 = arith.truncf %129 : vector<200x256xf32> to vector<200x256xbf16>
    %cst = arith.constant dense<0.000000e+00> : vector<16x256xf32>
    %132 = tpu.matmul %130, %131, %cst {dimension_numbers = #tpu.dot_dimension_numbers<[1], [0], [0], [1], [0, 0, 1, 1], [], []>} : vector<16x200xbf16>, vector<200x256xbf16>, vector<16x256xf32> -> vector<16x256xf32>
    %cst_7 = arith.constant 0.000000e+00 : f32
    %133 = vector.broadcast %cst_7 : f32 to vector<16x256xf32>
    %134 = arith.maximumf %132, %133 : vector<16x256xf32>
    %c0_8 = arith.constant 0 : index
    %c0_9 = arith.constant 0 : index
    %135 = vector.load %arg4[%c0_8, %c0_9] : memref<16x1xf32, #tpu.memory_space<vmem>>, vector<16x1xf32>
    %136 = vector.broadcast %135 : vector<16x1xf32> to vector<16x256xf32>
    %137 = arith.mulf %134, %136 : vector<16x256xf32>
    %c34_i32_10 = arith.constant 34 : i32
    %138 = tpu.dynamic_rotate %137 by %c34_i32_10 dim 1 : vector<16x256xf32>, i32 -> vector<16x256xf32>
    %139 = vector.extract_strided_slice %0 {offsets = [0, 0, 0], sizes = [1, 1, 256], strides = [1, 1, 1]} : vector<25x1x256xf32> to vector<1x1x256xf32>
    %140 = vector.shape_cast %139 : vector<1x1x256xf32> to vector<1x256xf32>
    %141 = vector.broadcast %140 : vector<1x256xf32> to vector<16x256xf32>
    %142 = arith.mulf %138, %141 : vector<16x256xf32>
    %c33_i32_11 = arith.constant 33 : i32
    %143 = tpu.dynamic_rotate %137 by %c33_i32_11 dim 1 : vector<16x256xf32>, i32 -> vector<16x256xf32>
    %144 = vector.extract_strided_slice %0 {offsets = [1, 0, 0], sizes = [1, 1, 256], strides = [1, 1, 1]} : vector<25x1x256xf32> to vector<1x1x256xf32>
    %145 = vector.shape_cast %144 : vector<1x1x256xf32> to vector<1x256xf32>
    %146 = vector.broadcast %145 : vector<1x256xf32> to vector<16x256xf32>
    %147 = arith.mulf %143, %146 : vector<16x256xf32>
    %c32_i32_12 = arith.constant 32 : i32
    %148 = tpu.dynamic_rotate %137 by %c32_i32_12 dim 1 : vector<16x256xf32>, i32 -> vector<16x256xf32>
    %149 = vector.extract_strided_slice %0 {offsets = [2, 0, 0], sizes = [1, 1, 256], strides = [1, 1, 1]} : vector<25x1x256xf32> to vector<1x1x256xf32>
    %150 = vector.shape_cast %149 : vector<1x1x256xf32> to vector<1x256xf32>
    %151 = vector.broadcast %150 : vector<1x256xf32> to vector<16x256xf32>
    %152 = arith.mulf %148, %151 : vector<16x256xf32>
    %c31_i32_13 = arith.constant 31 : i32
    %153 = tpu.dynamic_rotate %137 by %c31_i32_13 dim 1 : vector<16x256xf32>, i32 -> vector<16x256xf32>
    %154 = vector.extract_strided_slice %0 {offsets = [3, 0, 0], sizes = [1, 1, 256], strides = [1, 1, 1]} : vector<25x1x256xf32> to vector<1x1x256xf32>
    %155 = vector.shape_cast %154 : vector<1x1x256xf32> to vector<1x256xf32>
    %156 = vector.broadcast %155 : vector<1x256xf32> to vector<16x256xf32>
    %157 = arith.mulf %153, %156 : vector<16x256xf32>
    %c30_i32_14 = arith.constant 30 : i32
    %158 = tpu.dynamic_rotate %137 by %c30_i32_14 dim 1 : vector<16x256xf32>, i32 -> vector<16x256xf32>
    %159 = vector.extract_strided_slice %0 {offsets = [4, 0, 0], sizes = [1, 1, 256], strides = [1, 1, 1]} : vector<25x1x256xf32> to vector<1x1x256xf32>
    %160 = vector.shape_cast %159 : vector<1x1x256xf32> to vector<1x256xf32>
    %161 = vector.broadcast %160 : vector<1x256xf32> to vector<16x256xf32>
    %162 = arith.mulf %158, %161 : vector<16x256xf32>
    %c18_i32_15 = arith.constant 18 : i32
    %163 = tpu.dynamic_rotate %137 by %c18_i32_15 dim 1 : vector<16x256xf32>, i32 -> vector<16x256xf32>
    %164 = vector.extract_strided_slice %0 {offsets = [5, 0, 0], sizes = [1, 1, 256], strides = [1, 1, 1]} : vector<25x1x256xf32> to vector<1x1x256xf32>
    %165 = vector.shape_cast %164 : vector<1x1x256xf32> to vector<1x256xf32>
    %166 = vector.broadcast %165 : vector<1x256xf32> to vector<16x256xf32>
    %167 = arith.mulf %163, %166 : vector<16x256xf32>
    %c17_i32_16 = arith.constant 17 : i32
    %168 = tpu.dynamic_rotate %137 by %c17_i32_16 dim 1 : vector<16x256xf32>, i32 -> vector<16x256xf32>
    %169 = vector.extract_strided_slice %0 {offsets = [6, 0, 0], sizes = [1, 1, 256], strides = [1, 1, 1]} : vector<25x1x256xf32> to vector<1x1x256xf32>
    %170 = vector.shape_cast %169 : vector<1x1x256xf32> to vector<1x256xf32>
    %171 = vector.broadcast %170 : vector<1x256xf32> to vector<16x256xf32>
    %172 = arith.mulf %168, %171 : vector<16x256xf32>
    %c16_i32_17 = arith.constant 16 : i32
    %173 = tpu.dynamic_rotate %137 by %c16_i32_17 dim 1 : vector<16x256xf32>, i32 -> vector<16x256xf32>
    %174 = vector.extract_strided_slice %0 {offsets = [7, 0, 0], sizes = [1, 1, 256], strides = [1, 1, 1]} : vector<25x1x256xf32> to vector<1x1x256xf32>
    %175 = vector.shape_cast %174 : vector<1x1x256xf32> to vector<1x256xf32>
    %176 = vector.broadcast %175 : vector<1x256xf32> to vector<16x256xf32>
    %177 = arith.mulf %173, %176 : vector<16x256xf32>
    %c15_i32_18 = arith.constant 15 : i32
    %178 = tpu.dynamic_rotate %137 by %c15_i32_18 dim 1 : vector<16x256xf32>, i32 -> vector<16x256xf32>
    %179 = vector.extract_strided_slice %0 {offsets = [8, 0, 0], sizes = [1, 1, 256], strides = [1, 1, 1]} : vector<25x1x256xf32> to vector<1x1x256xf32>
    %180 = vector.shape_cast %179 : vector<1x1x256xf32> to vector<1x256xf32>
    %181 = vector.broadcast %180 : vector<1x256xf32> to vector<16x256xf32>
    %182 = arith.mulf %178, %181 : vector<16x256xf32>
    %c14_i32_19 = arith.constant 14 : i32
    %183 = tpu.dynamic_rotate %137 by %c14_i32_19 dim 1 : vector<16x256xf32>, i32 -> vector<16x256xf32>
    %184 = vector.extract_strided_slice %0 {offsets = [9, 0, 0], sizes = [1, 1, 256], strides = [1, 1, 1]} : vector<25x1x256xf32> to vector<1x1x256xf32>
    %185 = vector.shape_cast %184 : vector<1x1x256xf32> to vector<1x256xf32>
    %186 = vector.broadcast %185 : vector<1x256xf32> to vector<16x256xf32>
    %187 = arith.mulf %183, %186 : vector<16x256xf32>
    %c2_i32_20 = arith.constant 2 : i32
    %188 = tpu.dynamic_rotate %137 by %c2_i32_20 dim 1 : vector<16x256xf32>, i32 -> vector<16x256xf32>
    %189 = vector.extract_strided_slice %0 {offsets = [10, 0, 0], sizes = [1, 1, 256], strides = [1, 1, 1]} : vector<25x1x256xf32> to vector<1x1x256xf32>
    %190 = vector.shape_cast %189 : vector<1x1x256xf32> to vector<1x256xf32>
    %191 = vector.broadcast %190 : vector<1x256xf32> to vector<16x256xf32>
    %192 = arith.mulf %188, %191 : vector<16x256xf32>
    %c1_i32_21 = arith.constant 1 : i32
    %193 = tpu.dynamic_rotate %137 by %c1_i32_21 dim 1 : vector<16x256xf32>, i32 -> vector<16x256xf32>
    %194 = vector.extract_strided_slice %0 {offsets = [11, 0, 0], sizes = [1, 1, 256], strides = [1, 1, 1]} : vector<25x1x256xf32> to vector<1x1x256xf32>
    %195 = vector.shape_cast %194 : vector<1x1x256xf32> to vector<1x256xf32>
    %196 = vector.broadcast %195 : vector<1x256xf32> to vector<16x256xf32>
    %197 = arith.mulf %193, %196 : vector<16x256xf32>
    %198 = vector.extract_strided_slice %0 {offsets = [12, 0, 0], sizes = [1, 1, 256], strides = [1, 1, 1]} : vector<25x1x256xf32> to vector<1x1x256xf32>
    %199 = vector.shape_cast %198 : vector<1x1x256xf32> to vector<1x256xf32>
    %200 = vector.broadcast %199 : vector<1x256xf32> to vector<16x256xf32>
    %201 = arith.mulf %137, %200 : vector<16x256xf32>
    %c255_i32_22 = arith.constant 255 : i32
    %202 = tpu.dynamic_rotate %137 by %c255_i32_22 dim 1 : vector<16x256xf32>, i32 -> vector<16x256xf32>
    %203 = vector.extract_strided_slice %0 {offsets = [13, 0, 0], sizes = [1, 1, 256], strides = [1, 1, 1]} : vector<25x1x256xf32> to vector<1x1x256xf32>
    %204 = vector.shape_cast %203 : vector<1x1x256xf32> to vector<1x256xf32>
    %205 = vector.broadcast %204 : vector<1x256xf32> to vector<16x256xf32>
    %206 = arith.mulf %202, %205 : vector<16x256xf32>
    %c254_i32_23 = arith.constant 254 : i32
    %207 = tpu.dynamic_rotate %137 by %c254_i32_23 dim 1 : vector<16x256xf32>, i32 -> vector<16x256xf32>
    %208 = vector.extract_strided_slice %0 {offsets = [14, 0, 0], sizes = [1, 1, 256], strides = [1, 1, 1]} : vector<25x1x256xf32> to vector<1x1x256xf32>
    %209 = vector.shape_cast %208 : vector<1x1x256xf32> to vector<1x256xf32>
    %210 = vector.broadcast %209 : vector<1x256xf32> to vector<16x256xf32>
    %211 = arith.mulf %207, %210 : vector<16x256xf32>
    %c242_i32_24 = arith.constant 242 : i32
    %212 = tpu.dynamic_rotate %137 by %c242_i32_24 dim 1 : vector<16x256xf32>, i32 -> vector<16x256xf32>
    %213 = vector.extract_strided_slice %0 {offsets = [15, 0, 0], sizes = [1, 1, 256], strides = [1, 1, 1]} : vector<25x1x256xf32> to vector<1x1x256xf32>
    %214 = vector.shape_cast %213 : vector<1x1x256xf32> to vector<1x256xf32>
    %215 = vector.broadcast %214 : vector<1x256xf32> to vector<16x256xf32>
    %216 = arith.mulf %212, %215 : vector<16x256xf32>
    %c241_i32_25 = arith.constant 241 : i32
    %217 = tpu.dynamic_rotate %137 by %c241_i32_25 dim 1 : vector<16x256xf32>, i32 -> vector<16x256xf32>
    %218 = vector.extract_strided_slice %0 {offsets = [16, 0, 0], sizes = [1, 1, 256], strides = [1, 1, 1]} : vector<25x1x256xf32> to vector<1x1x256xf32>
    %219 = vector.shape_cast %218 : vector<1x1x256xf32> to vector<1x256xf32>
    %220 = vector.broadcast %219 : vector<1x256xf32> to vector<16x256xf32>
    %221 = arith.mulf %217, %220 : vector<16x256xf32>
    %c240_i32_26 = arith.constant 240 : i32
    %222 = tpu.dynamic_rotate %137 by %c240_i32_26 dim 1 : vector<16x256xf32>, i32 -> vector<16x256xf32>
    %223 = vector.extract_strided_slice %0 {offsets = [17, 0, 0], sizes = [1, 1, 256], strides = [1, 1, 1]} : vector<25x1x256xf32> to vector<1x1x256xf32>
    %224 = vector.shape_cast %223 : vector<1x1x256xf32> to vector<1x256xf32>
    %225 = vector.broadcast %224 : vector<1x256xf32> to vector<16x256xf32>
    %226 = arith.mulf %222, %225 : vector<16x256xf32>
    %c239_i32_27 = arith.constant 239 : i32
    %227 = tpu.dynamic_rotate %137 by %c239_i32_27 dim 1 : vector<16x256xf32>, i32 -> vector<16x256xf32>
    %228 = vector.extract_strided_slice %0 {offsets = [18, 0, 0], sizes = [1, 1, 256], strides = [1, 1, 1]} : vector<25x1x256xf32> to vector<1x1x256xf32>
    %229 = vector.shape_cast %228 : vector<1x1x256xf32> to vector<1x256xf32>
    %230 = vector.broadcast %229 : vector<1x256xf32> to vector<16x256xf32>
    %231 = arith.mulf %227, %230 : vector<16x256xf32>
    %c238_i32_28 = arith.constant 238 : i32
    %232 = tpu.dynamic_rotate %137 by %c238_i32_28 dim 1 : vector<16x256xf32>, i32 -> vector<16x256xf32>
    %233 = vector.extract_strided_slice %0 {offsets = [19, 0, 0], sizes = [1, 1, 256], strides = [1, 1, 1]} : vector<25x1x256xf32> to vector<1x1x256xf32>
    %234 = vector.shape_cast %233 : vector<1x1x256xf32> to vector<1x256xf32>
    %235 = vector.broadcast %234 : vector<1x256xf32> to vector<16x256xf32>
    %236 = arith.mulf %232, %235 : vector<16x256xf32>
    %c226_i32_29 = arith.constant 226 : i32
    %237 = tpu.dynamic_rotate %137 by %c226_i32_29 dim 1 : vector<16x256xf32>, i32 -> vector<16x256xf32>
    %238 = vector.extract_strided_slice %0 {offsets = [20, 0, 0], sizes = [1, 1, 256], strides = [1, 1, 1]} : vector<25x1x256xf32> to vector<1x1x256xf32>
    %239 = vector.shape_cast %238 : vector<1x1x256xf32> to vector<1x256xf32>
    %240 = vector.broadcast %239 : vector<1x256xf32> to vector<16x256xf32>
    %241 = arith.mulf %237, %240 : vector<16x256xf32>
    %c225_i32_30 = arith.constant 225 : i32
    %242 = tpu.dynamic_rotate %137 by %c225_i32_30 dim 1 : vector<16x256xf32>, i32 -> vector<16x256xf32>
    %243 = vector.extract_strided_slice %0 {offsets = [21, 0, 0], sizes = [1, 1, 256], strides = [1, 1, 1]} : vector<25x1x256xf32> to vector<1x1x256xf32>
    %244 = vector.shape_cast %243 : vector<1x1x256xf32> to vector<1x256xf32>
    %245 = vector.broadcast %244 : vector<1x256xf32> to vector<16x256xf32>
    %246 = arith.mulf %242, %245 : vector<16x256xf32>
    %c224_i32_31 = arith.constant 224 : i32
    %247 = tpu.dynamic_rotate %137 by %c224_i32_31 dim 1 : vector<16x256xf32>, i32 -> vector<16x256xf32>
    %248 = vector.extract_strided_slice %0 {offsets = [22, 0, 0], sizes = [1, 1, 256], strides = [1, 1, 1]} : vector<25x1x256xf32> to vector<1x1x256xf32>
    %249 = vector.shape_cast %248 : vector<1x1x256xf32> to vector<1x256xf32>
    %250 = vector.broadcast %249 : vector<1x256xf32> to vector<16x256xf32>
    %251 = arith.mulf %247, %250 : vector<16x256xf32>
    %c223_i32_32 = arith.constant 223 : i32
    %252 = tpu.dynamic_rotate %137 by %c223_i32_32 dim 1 : vector<16x256xf32>, i32 -> vector<16x256xf32>
    %253 = vector.extract_strided_slice %0 {offsets = [23, 0, 0], sizes = [1, 1, 256], strides = [1, 1, 1]} : vector<25x1x256xf32> to vector<1x1x256xf32>
    %254 = vector.shape_cast %253 : vector<1x1x256xf32> to vector<1x256xf32>
    %255 = vector.broadcast %254 : vector<1x256xf32> to vector<16x256xf32>
    %256 = arith.mulf %252, %255 : vector<16x256xf32>
    %c222_i32_33 = arith.constant 222 : i32
    %257 = tpu.dynamic_rotate %137 by %c222_i32_33 dim 1 : vector<16x256xf32>, i32 -> vector<16x256xf32>
    %258 = vector.extract_strided_slice %0 {offsets = [24, 0, 0], sizes = [1, 1, 256], strides = [1, 1, 1]} : vector<25x1x256xf32> to vector<1x1x256xf32>
    %259 = vector.shape_cast %258 : vector<1x1x256xf32> to vector<1x256xf32>
    %260 = vector.broadcast %259 : vector<1x256xf32> to vector<16x256xf32>
    %261 = arith.mulf %257, %260 : vector<16x256xf32>
    %262 = tpu.concatenate %142, %147, %152, %157, %162, %167, %172, %177, %182, %187, %192, %197, %201, %206, %211, %216 in 0 : vector<16x256xf32>, vector<16x256xf32>, vector<16x256xf32>, vector<16x256xf32>, vector<16x256xf32>, vector<16x256xf32>, vector<16x256xf32>, vector<16x256xf32>, vector<16x256xf32>, vector<16x256xf32>, vector<16x256xf32>, vector<16x256xf32>, vector<16x256xf32>, vector<16x256xf32>, vector<16x256xf32>, vector<16x256xf32> -> vector<256x256xf32>
    %263 = tpu.concatenate %221, %226, %231, %236, %241, %246, %251, %256, %261 in 0 : vector<16x256xf32>, vector<16x256xf32>, vector<16x256xf32>, vector<16x256xf32>, vector<16x256xf32>, vector<16x256xf32>, vector<16x256xf32>, vector<16x256xf32>, vector<16x256xf32> -> vector<144x256xf32>
    %264 = tpu.concatenate %262, %263 in 0 : vector<256x256xf32>, vector<144x256xf32> -> vector<400x256xf32>
    %c0_34 = arith.constant 0 : index
    %c0_35 = arith.constant 0 : index
    %265 = vector.load %arg5[%c0_34, %c0_35] : memref<24x400xbf16, #tpu.memory_space<vmem>>, vector<24x400xbf16>
    %266 = arith.truncf %264 : vector<400x256xf32> to vector<400x256xbf16>
    %cst_36 = arith.constant dense<0.000000e+00> : vector<24x256xf32>
    %267 = tpu.matmul %265, %266, %cst_36 {dimension_numbers = #tpu.dot_dimension_numbers<[1], [0], [0], [1], [0, 0, 1, 1], [], []>} : vector<24x400xbf16>, vector<400x256xbf16>, vector<24x256xf32> -> vector<24x256xf32>
    %cst_37 = arith.constant 0.000000e+00 : f32
    %268 = vector.broadcast %cst_37 : f32 to vector<24x256xf32>
    %269 = arith.maximumf %267, %268 : vector<24x256xf32>
    %c0_38 = arith.constant 0 : index
    %c0_39 = arith.constant 0 : index
    %270 = vector.load %arg6[%c0_38, %c0_39] : memref<24x1xf32, #tpu.memory_space<vmem>>, vector<24x1xf32>
    %271 = vector.broadcast %270 : vector<24x1xf32> to vector<24x256xf32>
    %272 = arith.mulf %269, %271 : vector<24x256xf32>
    %273 = vector.extract_strided_slice %272 {offsets = [0, 0], sizes = [8, 256], strides = [1, 1]} : vector<24x256xf32> to vector<8x256xf32>
    %274 = vector.extract_strided_slice %272 {offsets = [8, 0], sizes = [8, 256], strides = [1, 1]} : vector<24x256xf32> to vector<8x256xf32>
    %275 = arith.addf %273, %274 : vector<8x256xf32>
    %276 = vector.extract_strided_slice %272 {offsets = [16, 0], sizes = [8, 256], strides = [1, 1]} : vector<24x256xf32> to vector<8x256xf32>
    %277 = arith.addf %275, %276 : vector<8x256xf32>
    %c34_i32_40 = arith.constant 34 : i32
    %278 = tpu.dynamic_rotate %277 by %c34_i32_40 dim 1 : vector<8x256xf32>, i32 -> vector<8x256xf32>
    %279 = vector.extract_strided_slice %0 {offsets = [0, 0, 0], sizes = [1, 1, 256], strides = [1, 1, 1]} : vector<25x1x256xf32> to vector<1x1x256xf32>
    %280 = vector.shape_cast %279 : vector<1x1x256xf32> to vector<1x256xf32>
    %281 = vector.broadcast %280 : vector<1x256xf32> to vector<8x256xf32>
    %282 = arith.mulf %278, %281 : vector<8x256xf32>
    %c33_i32_41 = arith.constant 33 : i32
    %283 = tpu.dynamic_rotate %277 by %c33_i32_41 dim 1 : vector<8x256xf32>, i32 -> vector<8x256xf32>
    %284 = vector.extract_strided_slice %0 {offsets = [1, 0, 0], sizes = [1, 1, 256], strides = [1, 1, 1]} : vector<25x1x256xf32> to vector<1x1x256xf32>
    %285 = vector.shape_cast %284 : vector<1x1x256xf32> to vector<1x256xf32>
    %286 = vector.broadcast %285 : vector<1x256xf32> to vector<8x256xf32>
    %287 = arith.mulf %283, %286 : vector<8x256xf32>
    %c32_i32_42 = arith.constant 32 : i32
    %288 = tpu.dynamic_rotate %277 by %c32_i32_42 dim 1 : vector<8x256xf32>, i32 -> vector<8x256xf32>
    %289 = vector.extract_strided_slice %0 {offsets = [2, 0, 0], sizes = [1, 1, 256], strides = [1, 1, 1]} : vector<25x1x256xf32> to vector<1x1x256xf32>
    %290 = vector.shape_cast %289 : vector<1x1x256xf32> to vector<1x256xf32>
    %291 = vector.broadcast %290 : vector<1x256xf32> to vector<8x256xf32>
    %292 = arith.mulf %288, %291 : vector<8x256xf32>
    %c31_i32_43 = arith.constant 31 : i32
    %293 = tpu.dynamic_rotate %277 by %c31_i32_43 dim 1 : vector<8x256xf32>, i32 -> vector<8x256xf32>
    %294 = vector.extract_strided_slice %0 {offsets = [3, 0, 0], sizes = [1, 1, 256], strides = [1, 1, 1]} : vector<25x1x256xf32> to vector<1x1x256xf32>
    %295 = vector.shape_cast %294 : vector<1x1x256xf32> to vector<1x256xf32>
    %296 = vector.broadcast %295 : vector<1x256xf32> to vector<8x256xf32>
    %297 = arith.mulf %293, %296 : vector<8x256xf32>
    %c30_i32_44 = arith.constant 30 : i32
    %298 = tpu.dynamic_rotate %277 by %c30_i32_44 dim 1 : vector<8x256xf32>, i32 -> vector<8x256xf32>
    %299 = vector.extract_strided_slice %0 {offsets = [4, 0, 0], sizes = [1, 1, 256], strides = [1, 1, 1]} : vector<25x1x256xf32> to vector<1x1x256xf32>
    %300 = vector.shape_cast %299 : vector<1x1x256xf32> to vector<1x256xf32>
    %301 = vector.broadcast %300 : vector<1x256xf32> to vector<8x256xf32>
    %302 = arith.mulf %298, %301 : vector<8x256xf32>
    %c18_i32_45 = arith.constant 18 : i32
    %303 = tpu.dynamic_rotate %277 by %c18_i32_45 dim 1 : vector<8x256xf32>, i32 -> vector<8x256xf32>
    %304 = vector.extract_strided_slice %0 {offsets = [5, 0, 0], sizes = [1, 1, 256], strides = [1, 1, 1]} : vector<25x1x256xf32> to vector<1x1x256xf32>
    %305 = vector.shape_cast %304 : vector<1x1x256xf32> to vector<1x256xf32>
    %306 = vector.broadcast %305 : vector<1x256xf32> to vector<8x256xf32>
    %307 = arith.mulf %303, %306 : vector<8x256xf32>
    %c17_i32_46 = arith.constant 17 : i32
    %308 = tpu.dynamic_rotate %277 by %c17_i32_46 dim 1 : vector<8x256xf32>, i32 -> vector<8x256xf32>
    %309 = vector.extract_strided_slice %0 {offsets = [6, 0, 0], sizes = [1, 1, 256], strides = [1, 1, 1]} : vector<25x1x256xf32> to vector<1x1x256xf32>
    %310 = vector.shape_cast %309 : vector<1x1x256xf32> to vector<1x256xf32>
    %311 = vector.broadcast %310 : vector<1x256xf32> to vector<8x256xf32>
    %312 = arith.mulf %308, %311 : vector<8x256xf32>
    %c16_i32_47 = arith.constant 16 : i32
    %313 = tpu.dynamic_rotate %277 by %c16_i32_47 dim 1 : vector<8x256xf32>, i32 -> vector<8x256xf32>
    %314 = vector.extract_strided_slice %0 {offsets = [7, 0, 0], sizes = [1, 1, 256], strides = [1, 1, 1]} : vector<25x1x256xf32> to vector<1x1x256xf32>
    %315 = vector.shape_cast %314 : vector<1x1x256xf32> to vector<1x256xf32>
    %316 = vector.broadcast %315 : vector<1x256xf32> to vector<8x256xf32>
    %317 = arith.mulf %313, %316 : vector<8x256xf32>
    %c15_i32_48 = arith.constant 15 : i32
    %318 = tpu.dynamic_rotate %277 by %c15_i32_48 dim 1 : vector<8x256xf32>, i32 -> vector<8x256xf32>
    %319 = vector.extract_strided_slice %0 {offsets = [8, 0, 0], sizes = [1, 1, 256], strides = [1, 1, 1]} : vector<25x1x256xf32> to vector<1x1x256xf32>
    %320 = vector.shape_cast %319 : vector<1x1x256xf32> to vector<1x256xf32>
    %321 = vector.broadcast %320 : vector<1x256xf32> to vector<8x256xf32>
    %322 = arith.mulf %318, %321 : vector<8x256xf32>
    %c14_i32_49 = arith.constant 14 : i32
    %323 = tpu.dynamic_rotate %277 by %c14_i32_49 dim 1 : vector<8x256xf32>, i32 -> vector<8x256xf32>
    %324 = vector.extract_strided_slice %0 {offsets = [9, 0, 0], sizes = [1, 1, 256], strides = [1, 1, 1]} : vector<25x1x256xf32> to vector<1x1x256xf32>
    %325 = vector.shape_cast %324 : vector<1x1x256xf32> to vector<1x256xf32>
    %326 = vector.broadcast %325 : vector<1x256xf32> to vector<8x256xf32>
    %327 = arith.mulf %323, %326 : vector<8x256xf32>
    %c2_i32_50 = arith.constant 2 : i32
    %328 = tpu.dynamic_rotate %277 by %c2_i32_50 dim 1 : vector<8x256xf32>, i32 -> vector<8x256xf32>
    %329 = vector.extract_strided_slice %0 {offsets = [10, 0, 0], sizes = [1, 1, 256], strides = [1, 1, 1]} : vector<25x1x256xf32> to vector<1x1x256xf32>
    %330 = vector.shape_cast %329 : vector<1x1x256xf32> to vector<1x256xf32>
    %331 = vector.broadcast %330 : vector<1x256xf32> to vector<8x256xf32>
    %332 = arith.mulf %328, %331 : vector<8x256xf32>
    %c1_i32_51 = arith.constant 1 : i32
    %333 = tpu.dynamic_rotate %277 by %c1_i32_51 dim 1 : vector<8x256xf32>, i32 -> vector<8x256xf32>
    %334 = vector.extract_strided_slice %0 {offsets = [11, 0, 0], sizes = [1, 1, 256], strides = [1, 1, 1]} : vector<25x1x256xf32> to vector<1x1x256xf32>
    %335 = vector.shape_cast %334 : vector<1x1x256xf32> to vector<1x256xf32>
    %336 = vector.broadcast %335 : vector<1x256xf32> to vector<8x256xf32>
    %337 = arith.mulf %333, %336 : vector<8x256xf32>
    %338 = vector.extract_strided_slice %0 {offsets = [12, 0, 0], sizes = [1, 1, 256], strides = [1, 1, 1]} : vector<25x1x256xf32> to vector<1x1x256xf32>
    %339 = vector.shape_cast %338 : vector<1x1x256xf32> to vector<1x256xf32>
    %340 = vector.broadcast %339 : vector<1x256xf32> to vector<8x256xf32>
    %341 = arith.mulf %277, %340 : vector<8x256xf32>
    %c255_i32_52 = arith.constant 255 : i32
    %342 = tpu.dynamic_rotate %277 by %c255_i32_52 dim 1 : vector<8x256xf32>, i32 -> vector<8x256xf32>
    %343 = vector.extract_strided_slice %0 {offsets = [13, 0, 0], sizes = [1, 1, 256], strides = [1, 1, 1]} : vector<25x1x256xf32> to vector<1x1x256xf32>
    %344 = vector.shape_cast %343 : vector<1x1x256xf32> to vector<1x256xf32>
    %345 = vector.broadcast %344 : vector<1x256xf32> to vector<8x256xf32>
    %346 = arith.mulf %342, %345 : vector<8x256xf32>
    %c254_i32_53 = arith.constant 254 : i32
    %347 = tpu.dynamic_rotate %277 by %c254_i32_53 dim 1 : vector<8x256xf32>, i32 -> vector<8x256xf32>
    %348 = vector.extract_strided_slice %0 {offsets = [14, 0, 0], sizes = [1, 1, 256], strides = [1, 1, 1]} : vector<25x1x256xf32> to vector<1x1x256xf32>
    %349 = vector.shape_cast %348 : vector<1x1x256xf32> to vector<1x256xf32>
    %350 = vector.broadcast %349 : vector<1x256xf32> to vector<8x256xf32>
    %351 = arith.mulf %347, %350 : vector<8x256xf32>
    %c242_i32_54 = arith.constant 242 : i32
    %352 = tpu.dynamic_rotate %277 by %c242_i32_54 dim 1 : vector<8x256xf32>, i32 -> vector<8x256xf32>
    %353 = vector.extract_strided_slice %0 {offsets = [15, 0, 0], sizes = [1, 1, 256], strides = [1, 1, 1]} : vector<25x1x256xf32> to vector<1x1x256xf32>
    %354 = vector.shape_cast %353 : vector<1x1x256xf32> to vector<1x256xf32>
    %355 = vector.broadcast %354 : vector<1x256xf32> to vector<8x256xf32>
    %356 = arith.mulf %352, %355 : vector<8x256xf32>
    %c241_i32_55 = arith.constant 241 : i32
    %357 = tpu.dynamic_rotate %277 by %c241_i32_55 dim 1 : vector<8x256xf32>, i32 -> vector<8x256xf32>
    %358 = vector.extract_strided_slice %0 {offsets = [16, 0, 0], sizes = [1, 1, 256], strides = [1, 1, 1]} : vector<25x1x256xf32> to vector<1x1x256xf32>
    %359 = vector.shape_cast %358 : vector<1x1x256xf32> to vector<1x256xf32>
    %360 = vector.broadcast %359 : vector<1x256xf32> to vector<8x256xf32>
    %361 = arith.mulf %357, %360 : vector<8x256xf32>
    %c240_i32_56 = arith.constant 240 : i32
    %362 = tpu.dynamic_rotate %277 by %c240_i32_56 dim 1 : vector<8x256xf32>, i32 -> vector<8x256xf32>
    %363 = vector.extract_strided_slice %0 {offsets = [17, 0, 0], sizes = [1, 1, 256], strides = [1, 1, 1]} : vector<25x1x256xf32> to vector<1x1x256xf32>
    %364 = vector.shape_cast %363 : vector<1x1x256xf32> to vector<1x256xf32>
    %365 = vector.broadcast %364 : vector<1x256xf32> to vector<8x256xf32>
    %366 = arith.mulf %362, %365 : vector<8x256xf32>
    %c239_i32_57 = arith.constant 239 : i32
    %367 = tpu.dynamic_rotate %277 by %c239_i32_57 dim 1 : vector<8x256xf32>, i32 -> vector<8x256xf32>
    %368 = vector.extract_strided_slice %0 {offsets = [18, 0, 0], sizes = [1, 1, 256], strides = [1, 1, 1]} : vector<25x1x256xf32> to vector<1x1x256xf32>
    %369 = vector.shape_cast %368 : vector<1x1x256xf32> to vector<1x256xf32>
    %370 = vector.broadcast %369 : vector<1x256xf32> to vector<8x256xf32>
    %371 = arith.mulf %367, %370 : vector<8x256xf32>
    %c238_i32_58 = arith.constant 238 : i32
    %372 = tpu.dynamic_rotate %277 by %c238_i32_58 dim 1 : vector<8x256xf32>, i32 -> vector<8x256xf32>
    %373 = vector.extract_strided_slice %0 {offsets = [19, 0, 0], sizes = [1, 1, 256], strides = [1, 1, 1]} : vector<25x1x256xf32> to vector<1x1x256xf32>
    %374 = vector.shape_cast %373 : vector<1x1x256xf32> to vector<1x256xf32>
    %375 = vector.broadcast %374 : vector<1x256xf32> to vector<8x256xf32>
    %376 = arith.mulf %372, %375 : vector<8x256xf32>
    %c226_i32_59 = arith.constant 226 : i32
    %377 = tpu.dynamic_rotate %277 by %c226_i32_59 dim 1 : vector<8x256xf32>, i32 -> vector<8x256xf32>
    %378 = vector.extract_strided_slice %0 {offsets = [20, 0, 0], sizes = [1, 1, 256], strides = [1, 1, 1]} : vector<25x1x256xf32> to vector<1x1x256xf32>
    %379 = vector.shape_cast %378 : vector<1x1x256xf32> to vector<1x256xf32>
    %380 = vector.broadcast %379 : vector<1x256xf32> to vector<8x256xf32>
    %381 = arith.mulf %377, %380 : vector<8x256xf32>
    %c225_i32_60 = arith.constant 225 : i32
    %382 = tpu.dynamic_rotate %277 by %c225_i32_60 dim 1 : vector<8x256xf32>, i32 -> vector<8x256xf32>
    %383 = vector.extract_strided_slice %0 {offsets = [21, 0, 0], sizes = [1, 1, 256], strides = [1, 1, 1]} : vector<25x1x256xf32> to vector<1x1x256xf32>
    %384 = vector.shape_cast %383 : vector<1x1x256xf32> to vector<1x256xf32>
    %385 = vector.broadcast %384 : vector<1x256xf32> to vector<8x256xf32>
    %386 = arith.mulf %382, %385 : vector<8x256xf32>
    %c224_i32_61 = arith.constant 224 : i32
    %387 = tpu.dynamic_rotate %277 by %c224_i32_61 dim 1 : vector<8x256xf32>, i32 -> vector<8x256xf32>
    %388 = vector.extract_strided_slice %0 {offsets = [22, 0, 0], sizes = [1, 1, 256], strides = [1, 1, 1]} : vector<25x1x256xf32> to vector<1x1x256xf32>
    %389 = vector.shape_cast %388 : vector<1x1x256xf32> to vector<1x256xf32>
    %390 = vector.broadcast %389 : vector<1x256xf32> to vector<8x256xf32>
    %391 = arith.mulf %387, %390 : vector<8x256xf32>
    %c223_i32_62 = arith.constant 223 : i32
    %392 = tpu.dynamic_rotate %277 by %c223_i32_62 dim 1 : vector<8x256xf32>, i32 -> vector<8x256xf32>
    %393 = vector.extract_strided_slice %0 {offsets = [23, 0, 0], sizes = [1, 1, 256], strides = [1, 1, 1]} : vector<25x1x256xf32> to vector<1x1x256xf32>
    %394 = vector.shape_cast %393 : vector<1x1x256xf32> to vector<1x256xf32>
    %395 = vector.broadcast %394 : vector<1x256xf32> to vector<8x256xf32>
    %396 = arith.mulf %392, %395 : vector<8x256xf32>
    %c222_i32_63 = arith.constant 222 : i32
    %397 = tpu.dynamic_rotate %277 by %c222_i32_63 dim 1 : vector<8x256xf32>, i32 -> vector<8x256xf32>
    %398 = vector.extract_strided_slice %0 {offsets = [24, 0, 0], sizes = [1, 1, 256], strides = [1, 1, 1]} : vector<25x1x256xf32> to vector<1x1x256xf32>
    %399 = vector.shape_cast %398 : vector<1x1x256xf32> to vector<1x256xf32>
    %400 = vector.broadcast %399 : vector<1x256xf32> to vector<8x256xf32>
    %401 = arith.mulf %397, %400 : vector<8x256xf32>
    %402 = tpu.concatenate %282, %287, %292, %297, %302, %307, %312, %317, %322, %327, %332, %337, %341, %346, %351, %356 in 0 : vector<8x256xf32>, vector<8x256xf32>, vector<8x256xf32>, vector<8x256xf32>, vector<8x256xf32>, vector<8x256xf32>, vector<8x256xf32>, vector<8x256xf32>, vector<8x256xf32>, vector<8x256xf32>, vector<8x256xf32>, vector<8x256xf32>, vector<8x256xf32>, vector<8x256xf32>, vector<8x256xf32>, vector<8x256xf32> -> vector<128x256xf32>
    %403 = tpu.concatenate %361, %366, %371, %376, %381, %386, %391, %396, %401 in 0 : vector<8x256xf32>, vector<8x256xf32>, vector<8x256xf32>, vector<8x256xf32>, vector<8x256xf32>, vector<8x256xf32>, vector<8x256xf32>, vector<8x256xf32>, vector<8x256xf32> -> vector<72x256xf32>
    %404 = tpu.concatenate %402, %403 in 0 : vector<128x256xf32>, vector<72x256xf32> -> vector<200x256xf32>
    %c0_64 = arith.constant 0 : index
    %c0_65 = arith.constant 0 : index
    %405 = vector.load %arg7[%c0_64, %c0_65] : memref<24x200xbf16, #tpu.memory_space<vmem>>, vector<24x200xbf16>
    %406 = arith.truncf %404 : vector<200x256xf32> to vector<200x256xbf16>
    %cst_66 = arith.constant dense<0.000000e+00> : vector<24x256xf32>
    %407 = tpu.matmul %405, %406, %cst_66 {dimension_numbers = #tpu.dot_dimension_numbers<[1], [0], [0], [1], [0, 0, 1, 1], [], []>} : vector<24x200xbf16>, vector<200x256xbf16>, vector<24x256xf32> -> vector<24x256xf32>
    %cst_67 = arith.constant 0.000000e+00 : f32
    %408 = vector.broadcast %cst_67 : f32 to vector<24x256xf32>
    %409 = arith.maximumf %407, %408 : vector<24x256xf32>
    %c0_68 = arith.constant 0 : index
    %c0_69 = arith.constant 0 : index
    %410 = vector.load %arg8[%c0_68, %c0_69] : memref<24x1xf32, #tpu.memory_space<vmem>>, vector<24x1xf32>
    %411 = vector.broadcast %410 : vector<24x1xf32> to vector<24x256xf32>
    %412 = arith.mulf %409, %411 : vector<24x256xf32>
    %413 = vector.extract_strided_slice %412 {offsets = [0, 0], sizes = [8, 256], strides = [1, 1]} : vector<24x256xf32> to vector<8x256xf32>
    %414 = vector.extract_strided_slice %412 {offsets = [8, 0], sizes = [8, 256], strides = [1, 1]} : vector<24x256xf32> to vector<8x256xf32>
    %415 = arith.addf %413, %414 : vector<8x256xf32>
    %416 = vector.extract_strided_slice %412 {offsets = [16, 0], sizes = [8, 256], strides = [1, 1]} : vector<24x256xf32> to vector<8x256xf32>
    %417 = arith.addf %415, %416 : vector<8x256xf32>
    %c0_70 = arith.constant 0 : index
    %c0_71 = arith.constant 0 : index
    %418 = vector.load %arg9[%c0_70, %c0_71] : memref<10x8xf32, #tpu.memory_space<vmem>>, vector<10x8xf32>
    %cst_72 = arith.constant dense<0.000000e+00> : vector<10x256xf32>
    %419 = tpu.matmul %418, %417, %cst_72 {dimension_numbers = #tpu.dot_dimension_numbers<[1], [0], [0], [1], [0, 0, 1, 1], [], []>} : vector<10x8xf32>, vector<8x256xf32>, vector<10x256xf32> -> vector<10x256xf32>
    %cst_73 = arith.constant dense<0.000000e+00> : vector<10xf32>
    %420 = vector.multi_reduction <add>, %419, %cst_73 [1] : vector<10x256xf32> to vector<10xf32>
    %421 = vector.shape_cast %420 : vector<10xf32> to vector<10x1xf32>
    %cst_74 = arith.constant 2.560000e+02 : f32
    %422 = vector.broadcast %cst_74 : f32 to vector<10x1xf32>
    %423 = arith.divf %421, %422 : vector<10x1xf32>
    %c0_75 = arith.constant 0 : index
    %c0_76 = arith.constant 0 : index
    %424 = vector.load %arg10[%c0_75, %c0_76] : memref<10x1xf32, #tpu.memory_space<vmem>>, vector<10x1xf32>
    %425 = arith.addf %423, %424 : vector<10x1xf32>
    %426 = vector.shape_cast %425 : vector<10x1xf32> to vector<1x10x1xf32>
    %c0_77 = arith.constant 0 : index
    %c0_78 = arith.constant 0 : index
    %c0_79 = arith.constant 0 : index
    %427 = vector.load %arg11[%c0_77, %c0_78, %c0_79] : memref<1x10x1xf32, #tpu.memory_space<vmem>>, vector<1x10x1xf32>
    tpu.vector_store %arg11[%c0_77, %c0_78, %c0_79], %426 {strides = array<i32>} : memref<1x10x1xf32, #tpu.memory_space<vmem>>, vector<1x10x1xf32>,
    return
  }
  func.func @transform_0(%arg0: i32) -> (i32, i32, i32) {
    %c0_i32 = arith.constant 0 : i32
    %c0_i32_0 = arith.constant 0 : i32
    %c0_i32_1 = arith.constant 0 : i32
    return %arg0, %c0_i32, %c0_i32_0 : i32, i32, i32
  }
  func.func @transform_1(%arg0: i32) -> (i32, i32, i32) {
    %c0_i32 = arith.constant 0 : i32
    %c0_i32_0 = arith.constant 0 : i32
    %c0_i32_1 = arith.constant 0 : i32
    %c0_i32_2 = arith.constant 0 : i32
    return %c0_i32, %c0_i32_0, %c0_i32_1 : i32, i32, i32
  }
  func.func @transform_2(%arg0: i32) -> (i32, i32) {
    %c0_i32 = arith.constant 0 : i32
    %c0_i32_0 = arith.constant 0 : i32
    %c0_i32_1 = arith.constant 0 : i32
    return %c0_i32, %c0_i32_0 : i32, i32
  }
  func.func @transform_3(%arg0: i32) -> (i32, i32) {
    %c0_i32 = arith.constant 0 : i32
    %c0_i32_0 = arith.constant 0 : i32
    %c0_i32_1 = arith.constant 0 : i32
    return %c0_i32, %c0_i32_0 : i32, i32
  }
  func.func @transform_4(%arg0: i32) -> (i32, i32) {
    %c0_i32 = arith.constant 0 : i32
    %c0_i32_0 = arith.constant 0 : i32
    %c0_i32_1 = arith.constant 0 : i32
    return %c0_i32, %c0_i32_0 : i32, i32
  }
  func.func @transform_5(%arg0: i32) -> (i32, i32) {
    %c0_i32 = arith.constant 0 : i32
    %c0_i32_0 = arith.constant 0 : i32
    %c0_i32_1 = arith.constant 0 : i32
    return %c0_i32, %c0_i32_0 : i32, i32
  }
  func.func @transform_6(%arg0: i32) -> (i32, i32) {
    %c0_i32 = arith.constant 0 : i32
    %c0_i32_0 = arith.constant 0 : i32
    %c0_i32_1 = arith.constant 0 : i32
    return %c0_i32, %c0_i32_0 : i32, i32
  }
  func.func @transform_7(%arg0: i32) -> (i32, i32) {
    %c0_i32 = arith.constant 0 : i32
    %c0_i32_0 = arith.constant 0 : i32
    %c0_i32_1 = arith.constant 0 : i32
    return %c0_i32, %c0_i32_0 : i32, i32
  }
  func.func @transform_8(%arg0: i32) -> (i32, i32) {
    %c0_i32 = arith.constant 0 : i32
    %c0_i32_0 = arith.constant 0 : i32
    %c0_i32_1 = arith.constant 0 : i32
    return %c0_i32, %c0_i32_0 : i32, i32
  }
  func.func @transform_9(%arg0: i32) -> (i32, i32) {
    %c0_i32 = arith.constant 0 : i32
    %c0_i32_0 = arith.constant 0 : i32
    %c0_i32_1 = arith.constant 0 : i32
    return %c0_i32, %c0_i32_0 : i32, i32
  }
  func.func @transform_10(%arg0: i32) -> (i32, i32, i32) {
    %c0_i32 = arith.constant 0 : i32
    %c0_i32_0 = arith.constant 0 : i32
    %c0_i32_1 = arith.constant 0 : i32
    return %arg0, %c0_i32, %c0_i32_0 : i32, i32, i32
  }
}

</mosaic_0001>

<llo_original>
// kernel: network_forward.1
$region0: #{network_forward.1}
  #allocation0 [shape = 'u32[]', space=smem, size = 0x4, offset = 0x4, fixed_abs, tag = 'smem constant byte address 0x4 - core index']
  #allocation1 [shape = 'u32[144,128]{1,0:T(1,128)}', space=vmem, size = 0x12000, scoped, tag = 'internal scratch']
  %s0 = inlined_call_operand.vmem [shape: f32[2,8,256], index: 0, kind: input, shape index: {}]
  %s1 = inlined_call_operand.vmem [shape: f32[25,1,256], index: 1, kind: input, shape index: {}]
  %s2 = inlined_call_operand.vmem [shape: bf16[16,200], index: 2, kind: input, shape index: {}]
  %s3 = inlined_call_operand.vmem [shape: f32[16,1], index: 3, kind: input, shape index: {}]
  %s4 = inlined_call_operand.vmem [shape: bf16[24,400], index: 4, kind: input, shape index: {}]
  %s5 = inlined_call_operand.vmem [shape: f32[24,1], index: 5, kind: input, shape index: {}]
  %s6 = inlined_call_operand.vmem [shape: bf16[24,200], index: 6, kind: input, shape index: {}]
  %s7 = inlined_call_operand.vmem [shape: f32[24,1], index: 7, kind: input, shape index: {}]
  %s8 = inlined_call_operand.vmem [shape: f32[10,8], index: 8, kind: input, shape index: {}]
  %s9 = inlined_call_operand.vmem [shape: f32[10,1], index: 9, kind: input, shape index: {}]
  %s10 = inlined_call_operand.vmem [shape: f32[2,10,1], index: 10, kind: output, shape index: {}]
  %s11 = sld [smem:[#allocation0]]
  $region73: #{network_forward.1} parent=0
    _
  %s13 = ssub.s32 1, %s11
  %s14 = scalar_select 0, %s13, %s11
  loop: start=0, step=1, limit=4
  $region2: #{network_forward.1} parent=0 // loop_pre_header
    _
  $region3: #{network_forward.1} parent=0 // loop_header
    %s16 = sphi 0, %s20
    %p17 = scmp.ge.s32.totalorder %s16, 4
    %s26 = sphi 0, %s28
    %s29 = sphi 0, %s26
    %s30 = sphi 0, %s29
    %s46 = sphi 0, %s30
    %s50 = sphi 0, %s50
    %s52 = sphi 0, %s50
    %s53 = sphi 0, %s52
    %s67 = sphi 0, %s53
    %s71 = sphi 0, %s71
    %s73 = sphi 0, %s71
    %s74 = sphi 0, %s73
    %s88 = sphi 0, %s74
    %s92 = sphi 0, %s92
    %s94 = sphi 0, %s92
    %s95 = sphi 0, %s94
    %s109 = sphi 0, %s95
    %s113 = sphi 0, %s113
    %s115 = sphi 0, %s113
    %s116 = sphi 0, %s115
    %s130 = sphi 0, %s116
    %s134 = sphi 0, %s134
    %s136 = sphi 0, %s134
    %s137 = sphi 0, %s136
    %s151 = sphi 0, %s137
    %s155 = sphi 0, %s155
    %s157 = sphi 0, %s155
    %s158 = sphi 0, %s157
    %s172 = sphi 0, %s158
    %s176 = sphi 0, %s176
    %s178 = sphi 0, %s176
    %s179 = sphi 0, %s178
    %s193 = sphi 0, %s179
    %s197 = sphi 0, %s197
    %s199 = sphi 0, %s197
    %s200 = sphi 0, %s199
    %s214 = sphi 0, %s200
    %s218 = sphi 0, %s218
    %s220 = sphi 0, %s218
    %s221 = sphi 0, %s220
    %s235 = sphi 0, %s221
    %s241 = sphi 0, %s243
    %s244 = sphi 0, %s241
    %s245 = sphi 0, %s244
    %s261 = sphi 0, %s245
  $region4: #{network_forward.1} parent=0 // loop_header_branch
    %19 = sbr.rel (%p17) target = $region8
  $region5: #{network_forward.1} parent=0 // loop_body
    %s21 = ssub.s32 %s16, 1
    %s22 = ssub.s32 %s16, 2
    %s23 = sadd.s32 %s16, 1
    %s24 = ssub.s32 %s16, %s23
    %p25 = scmp.eq.s32.totalorder %s24, 0
    %s27 = sadd.s32 %s26, 1
    %s28 = scalar_select %p25, %s26, %s27
    %p31 = pneg %p25
    %p32 = scmp.eq.s32.totalorder %s16, 1
    %p33 = por %p31, %p32
    %p34 = scmp.ne.s32.totalorder %s26, %s29
    %p35 = scmp.eq.s32.totalorder %s16, 0
    %p36 = por %p34, %p35
    %p37 = scmp.ne.s32.totalorder %s26, %s29
    %p38 = scmp.eq.s32.totalorder %s21, 1
    %p39 = por %p37, %p38
    %p40 = scmp.ne.s32.totalorder %s29, %s30
    %p41 = scmp.eq.s32.totalorder %s21, 0
    %p42 = por %p40, %p41
    %p43 = scmp.ne.s32.totalorder %s29, %s30
    %p44 = scmp.eq.s32.totalorder %s22, 1
    %p45 = por %p43, %p44
    %p47 = scmp.ne.s32.totalorder %s30, %s46
    %p48 = scmp.eq.s32.totalorder %s22, 0
    %p49 = por %p47, %p48
    %s51 = sadd.s32 %s50, 1
    %p54 = scmp.eq.s32.totalorder %s16, 1
    %p55 = scmp.ne.s32.totalorder %s50, %s52
    %p56 = scmp.eq.s32.totalorder %s16, 0
    %p57 = por %p55, %p56
    %p58 = scmp.ne.s32.totalorder %s50, %s52
    %p59 = scmp.eq.s32.totalorder %s21, 1
    %p60 = por %p58, %p59
    %p61 = scmp.ne.s32.totalorder %s52, %s53
    %p62 = scmp.eq.s32.totalorder %s21, 0
    %p63 = por %p61, %p62
    %p64 = scmp.ne.s32.totalorder %s52, %s53
    %p65 = scmp.eq.s32.totalorder %s22, 1
    %p66 = por %p64, %p65
    %p68 = scmp.ne.s32.totalorder %s53, %s67
    %p69 = scmp.eq.s32.totalorder %s22, 0
    %p70 = por %p68, %p69
    %s72 = sadd.s32 %s71, 1
    %p75 = scmp.eq.s32.totalorder %s16, 1
    %p76 = scmp.ne.s32.totalorder %s71, %s73
    %p77 = scmp.eq.s32.totalorder %s16, 0
    %p78 = por %p76, %p77
    %p79 = scmp.ne.s32.totalorder %s71, %s73
    %p80 = scmp.eq.s32.totalorder %s21, 1
    %p81 = por %p79, %p80
    %p82 = scmp.ne.s32.totalorder %s73, %s74
    %p83 = scmp.eq.s32.totalorder %s21, 0
    %p84 = por %p82, %p83
    %p85 = scmp.ne.s32.totalorder %s73, %s74
    %p86 = scmp.eq.s32.totalorder %s22, 1
    %p87 = por %p85, %p86
    %p89 = scmp.ne.s32.totalorder %s74, %s88
    %p90 = scmp.eq.s32.totalorder %s22, 0
    %p91 = por %p89, %p90
    %s93 = sadd.s32 %s92, 1
    %p96 = scmp.eq.s32.totalorder %s16, 1
    %p97 = scmp.ne.s32.totalorder %s92, %s94
    %p98 = scmp.eq.s32.totalorder %s16, 0
    %p99 = por %p97, %p98
    %p100 = scmp.ne.s32.totalorder %s92, %s94
    %p101 = scmp.eq.s32.totalorder %s21, 1
    %p102 = por %p100, %p101
    %p103 = scmp.ne.s32.totalorder %s94, %s95
    %p104 = scmp.eq.s32.totalorder %s21, 0
    %p105 = por %p103, %p104
    %p106 = scmp.ne.s32.totalorder %s94, %s95
    %p107 = scmp.eq.s32.totalorder %s22, 1
    %p108 = por %p106, %p107
    %p110 = scmp.ne.s32.totalorder %s95, %s109
    %p111 = scmp.eq.s32.totalorder %s22, 0
    %p112 = por %p110, %p111
    %s114 = sadd.s32 %s113, 1
    %p117 = scmp.eq.s32.totalorder %s16, 1
    %p118 = scmp.ne.s32.totalorder %s113, %s115
    %p119 = scmp.eq.s32.totalorder %s16, 0
    %p120 = por %p118, %p119
    %p121 = scmp.ne.s32.totalorder %s113, %s115
    %p122 = scmp.eq.s32.totalorder %s21, 1
    %p123 = por %p121, %p122
    %p124 = scmp.ne.s32.totalorder %s115, %s116
    %p125 = scmp.eq.s32.totalorder %s21, 0
    %p126 = por %p124, %p125
    %p127 = scmp.ne.s32.totalorder %s115, %s116
    %p128 = scmp.eq.s32.totalorder %s22, 1
    %p129 = por %p127, %p128
    %p131 = scmp.ne.s32.totalorder %s116, %s130
    %p132 = scmp.eq.s32.totalorder %s22, 0
    %p133 = por %p131, %p132
    %s135 = sadd.s32 %s134, 1
    %p138 = scmp.eq.s32.totalorder %s16, 1
    %p139 = scmp.ne.s32.totalorder %s134, %s136
    %p140 = scmp.eq.s32.totalorder %s16, 0
    %p141 = por %p139, %p140
    %p142 = scmp.ne.s32.totalorder %s134, %s136
    %p143 = scmp.eq.s32.totalorder %s21, 1
    %p144 = por %p142, %p143
    %p145 = scmp.ne.s32.totalorder %s136, %s137
    %p146 = scmp.eq.s32.totalorder %s21, 0
    %p147 = por %p145, %p146
    %p148 = scmp.ne.s32.totalorder %s136, %s137
    %p149 = scmp.eq.s32.totalorder %s22, 1
    %p150 = por %p148, %p149
    %p152 = scmp.ne.s32.totalorder %s137, %s151
    %p153 = scmp.eq.s32.totalorder %s22, 0
    %p154 = por %p152, %p153
    %s156 = sadd.s32 %s155, 1
    %p159 = scmp.eq.s32.totalorder %s16, 1
    %p160 = scmp.ne.s32.totalorder %s155, %s157
    %p161 = scmp.eq.s32.totalorder %s16, 0
    %p162 = por %p160, %p161
    %p163 = scmp.ne.s32.totalorder %s155, %s157
    %p164 = scmp.eq.s32.totalorder %s21, 1
    %p165 = por %p163, %p164
    %p166 = scmp.ne.s32.totalorder %s157, %s158
    %p167 = scmp.eq.s32.totalorder %s21, 0
    %p168 = por %p166, %p167
    %p169 = scmp.ne.s32.totalorder %s157, %s158
    %p170 = scmp.eq.s32.totalorder %s22, 1
    %p171 = por %p169, %p170
    %p173 = scmp.ne.s32.totalorder %s158, %s172
    %p174 = scmp.eq.s32.totalorder %s22, 0
    %p175 = por %p173, %p174
    %s177 = sadd.s32 %s176, 1
    %p180 = scmp.eq.s32.totalorder %s16, 1
    %p181 = scmp.ne.s32.totalorder %s176, %s178
    %p182 = scmp.eq.s32.totalorder %s16, 0
    %p183 = por %p181, %p182
    %p184 = scmp.ne.s32.totalorder %s176, %s178
    %p185 = scmp.eq.s32.totalorder %s21, 1
    %p186 = por %p184, %p185
    %p187 = scmp.ne.s32.totalorder %s178, %s179
    %p188 = scmp.eq.s32.totalorder %s21, 0
    %p189 = por %p187, %p188
    %p190 = scmp.ne.s32.totalorder %s178, %s179
    %p191 = scmp.eq.s32.totalorder %s22, 1
    %p192 = por %p190, %p191
    %p194 = scmp.ne.s32.totalorder %s179, %s193
    %p195 = scmp.eq.s32.totalorder %s22, 0
    %p196 = por %p194, %p195
    %s198 = sadd.s32 %s197, 1
    %p201 = scmp.eq.s32.totalorder %s16, 1
    %p202 = scmp.ne.s32.totalorder %s197, %s199
    %p203 = scmp.eq.s32.totalorder %s16, 0
    %p204 = por %p202, %p203
    %p205 = scmp.ne.s32.totalorder %s197, %s199
    %p206 = scmp.eq.s32.totalorder %s21, 1
    %p207 = por %p205, %p206
    %p208 = scmp.ne.s32.totalorder %s199, %s200
    %p209 = scmp.eq.s32.totalorder %s21, 0
    %p210 = por %p208, %p209
    %p211 = scmp.ne.s32.totalorder %s199, %s200
    %p212 = scmp.eq.s32.totalorder %s22, 1
    %p213 = por %p211, %p212
    %p215 = scmp.ne.s32.totalorder %s200, %s214
    %p216 = scmp.eq.s32.totalorder %s22, 0
    %p217 = por %p215, %p216
    %s219 = sadd.s32 %s218, 1
    %p222 = scmp.eq.s32.totalorder %s16, 1
    %p223 = scmp.ne.s32.totalorder %s218, %s220
    %p224 = scmp.eq.s32.totalorder %s16, 0
    %p225 = por %p223, %p224
    %p226 = scmp.ne.s32.totalorder %s218, %s220
    %p227 = scmp.eq.s32.totalorder %s21, 1
    %p228 = por %p226, %p227
    %p229 = scmp.ne.s32.totalorder %s220, %s221
    %p230 = scmp.eq.s32.totalorder %s21, 0
    %p231 = por %p229, %p230
    %p232 = scmp.ne.s32.totalorder %s220, %s221
    %p233 = scmp.eq.s32.totalorder %s22, 1
    %p234 = por %p232, %p233
    %p236 = scmp.ne.s32.totalorder %s221, %s235
    %p237 = scmp.eq.s32.totalorder %s22, 0
    %p238 = por %p236, %p237
    %s239 = ssub.s32 %s16, %s23
    %p240 = scmp.eq.s32.totalorder %s239, 0
    %s242 = sadd.s32 %s241, 1
    %s243 = scalar_select %p240, %s241, %s242
    %p246 = pneg %p240
    %p247 = scmp.eq.s32.totalorder %s16, 1
    %p248 = por %p246, %p247
    %p249 = scmp.ne.s32.totalorder %s241, %s244
    %p250 = scmp.eq.s32.totalorder %s16, 0
    %p251 = por %p249, %p250
    %p252 = scmp.ne.s32.totalorder %s241, %s244
    %p253 = scmp.eq.s32.totalorder %s21, 1
    %p254 = por %p252, %p253
    %p255 = scmp.ne.s32.totalorder %s244, %s245
    %p256 = scmp.eq.s32.totalorder %s21, 0
    %p257 = por %p255, %p256
    %p258 = scmp.ne.s32.totalorder %s244, %s245
    %p259 = scmp.eq.s32.totalorder %s22, 1
    %p260 = por %p258, %p259
    %p262 = scmp.ne.s32.totalorder %s245, %s261
    %p263 = scmp.eq.s32.totalorder %s22, 0
    %p264 = por %p262, %p263
    %p265 = scmp.le.s32.totalorder 1, %s16
    %p266 = scmp.lt.s32.totalorder %s16, 3
    %p267 = pnand %p265, %p266
    %p268 = pneg %p267
    // Predicated region
    $region9: #{network_forward.1} parent=5 // pred_check
      _
    $region10: #{network_forward.1} parent=5 // pred_check_branch
      %270 = sbr.rel (%p267) target = $region12
    $region11: #{network_forward.1} parent=5 // pred_region
      %s271 = ssub.s32 %s16, 1
      // Predicated region
      $region13: #{network_forward.1} parent=11 // pred_check
        %p272 = pneg %p63
      $region14: #{network_forward.1} parent=11 // pred_check_branch
        %274 = sbr.rel (%p272) target = $region16
      $region15: #{network_forward.1} parent=11 // pred_region
        _
      $region16: #{network_forward.1} parent=11 // pred_fallthru
        _
      // Predicated region
      $region17: #{network_forward.1} parent=11 // pred_check
        %p275 = pneg %p84
      $region18: #{network_forward.1} parent=11 // pred_check_branch
        %277 = sbr.rel (%p275) target = $region20
      $region19: #{network_forward.1} parent=11 // pred_region
        _
      $region20: #{network_forward.1} parent=11 // pred_fallthru
        _
      // Predicated region
      $region21: #{network_forward.1} parent=11 // pred_check
        %p278 = pneg %p105
      $region22: #{network_forward.1} parent=11 // pred_check_branch
        %280 = sbr.rel (%p278) target = $region24
      $region23: #{network_forward.1} parent=11 // pred_region
        _
      $region24: #{network_forward.1} parent=11 // pred_fallthru
        _
      // Predicated region
      $region25: #{network_forward.1} parent=11 // pred_check
        %p281 = pneg %p126
      $region26: #{network_forward.1} parent=11 // pred_check_branch
        %283 = sbr.rel (%p281) target = $region28
      $region27: #{network_forward.1} parent=11 // pred_region
        _
      $region28: #{network_forward.1} parent=11 // pred_fallthru
        _
      // Predicated region
      $region29: #{network_forward.1} parent=11 // pred_check
        %p284 = pneg %p147
      $region30: #{network_forward.1} parent=11 // pred_check_branch
        %286 = sbr.rel (%p284) target = $region32
      $region31: #{network_forward.1} parent=11 // pred_region
        _
      $region32: #{network_forward.1} parent=11 // pred_fallthru
        _
      // Predicated region
      $region33: #{network_forward.1} parent=11 // pred_check
        %p287 = pneg %p168
      $region34: #{network_forward.1} parent=11 // pred_check_branch
        %289 = sbr.rel (%p287) target = $region36
      $region35: #{network_forward.1} parent=11 // pred_region
        _
      $region36: #{network_forward.1} parent=11 // pred_fallthru
        _
      // Predicated region
      $region37: #{network_forward.1} parent=11 // pred_check
        %p290 = pneg %p189
      $region38: #{network_forward.1} parent=11 // pred_check_branch
        %292 = sbr.rel (%p290) target = $region40
      $region39: #{network_forward.1} parent=11 // pred_region
        _
      $region40: #{network_forward.1} parent=11 // pred_fallthru
        _
      // Predicated region
      $region41: #{network_forward.1} parent=11 // pred_check
        %p293 = pneg %p210
      $region42: #{network_forward.1} parent=11 // pred_check_branch
        %295 = sbr.rel (%p293) target = $region44
      $region43: #{network_forward.1} parent=11 // pred_region
        _
      $region44: #{network_forward.1} parent=11 // pred_fallthru
        _
      // Predicated region
      $region45: #{network_forward.1} parent=11 // pred_check
        %p296 = pneg %p231
      $region46: #{network_forward.1} parent=11 // pred_check_branch
        %298 = sbr.rel (%p296) target = $region48
      $region47: #{network_forward.1} parent=11 // pred_region
        _
      $region48: #{network_forward.1} parent=11 // pred_fallthru
        _
    $region12: #{network_forward.1} parent=5 // pred_fallthru
      _
    %p299 = scmp.lt.s32.totalorder %s16, 2
    // Predicated region
    $region49: #{network_forward.1} parent=5 // pred_check
      %p300 = pneg %p299
    $region50: #{network_forward.1} parent=5 // pred_check_branch
      %302 = sbr.rel (%p300) target = $region52
    $region51: #{network_forward.1} parent=5 // pred_region
      // Predicated region
      $region53: #{network_forward.1} parent=51 // pred_check
        %p303 = pneg %p36
      $region54: #{network_forward.1} parent=51 // pred_check_branch
        %305 = sbr.rel (%p303) target = $region56
      $region55: #{network_forward.1} parent=51 // pred_region
        %p306 = scmp.lt.s32.totalorder %s16, 1
        %s307 = scalar_select %p306, %s16, 1
        %s308 = smul.addr %s307, 2
        %s309 = smul.addr %s308, 8
        %s310 = scalar_lea.vmem %s0, %s309
      $region56: #{network_forward.1} parent=51 // pred_fallthru
        _
    $region52: #{network_forward.1} parent=5 // pred_fallthru
      _
    %p311 = scmp.le.s32.totalorder 1, %s16
    %p312 = scmp.lt.s32.totalorder %s16, 3
    %p313 = pnand %p311, %p312
    %p314 = pneg %p313
    // Predicated region
    $region57: #{network_forward.1} parent=5 // pred_check
      _
    $region58: #{network_forward.1} parent=5 // pred_check_branch
      %316 = sbr.rel (%p313) target = $region60
    $region59: #{network_forward.1} parent=5 // pred_region
      %s317 = ssub.s32 %s16, 1
      %p318 = scmp.lt.s32.totalorder %s21, 1
      %s319 = scalar_select %p318, %s21, 1
      %s320 = smul.addr %s319, 2
      %s321 = smul.addr %s320, 8
      %s322 = scalar_lea.vmem %s0, %s321
      %p323 = pneg %p42
      %p324 = pneg %p39
      %p325 = pneg %p63
      %p326 = pneg %p60
      %p327 = pneg %p84
      %p328 = pneg %p81
      %p329 = pneg %p105
      %p330 = pneg %p102
      %p331 = pneg %p126
      %p332 = pneg %p123
      %p333 = pneg %p147
      %p334 = pneg %p144
      %p335 = pneg %p168
      %p336 = pneg %p165
      %p337 = pneg %p189
      %p338 = pneg %p186
      %p339 = pneg %p210
      %p340 = pneg %p207
      %p341 = pneg %p231
      %p342 = pneg %p228
      %p343 = pneg %p257
      %p344 = pneg %p254
      %p345 = scmp.lt.s32.totalorder %s21, 1
      %s346 = scalar_select %p345, %s21, 1
      %s347 = smul.addr %s346, 2
      %s348 = smul.addr %s347, 8
      %s349 = scalar_lea.vmem %s10, %s348
      %p350 = scmp.lt.s32.totalorder %s21, 1
      %s351 = scalar_select %p350, %s21, 1
      %s352 = smul.addr %s351, 2
      %s353 = smul.addr %s352, 8
      %s354 = scalar_lea.vmem %s0, %s353
      %p355 = scmp.lt.s32.totalorder %s21, 1
      %s356 = scalar_select %p355, %s21, 1
      %s357 = smul.addr %s356, 2
      %s358 = smul.addr %s357, 8
      %s359 = scalar_lea.vmem %s10, %s358
      %v361 = vld [vmem:[%s1] sm:$0x3]
      %v362 = vld [vmem:[%s1 + $0x2] sm:$0x3]
      %v363 = vld [vmem:[%s1 + $0x4] sm:$0x3]
      %v364 = vld [vmem:[%s1 + $0x6] sm:$0x3]
      %v365 = vld [vmem:[%s1 + $0x8] sm:$0x3]
      %v366 = vld [vmem:[%s1 + $0xa] sm:$0x3]
      %v367 = vld [vmem:[%s1 + $0xc] sm:$0x3]
      %v368 = vld [vmem:[%s1 + $0xe] sm:$0x3]
      %v369 = vld [vmem:[%s1 + $0x10] sm:$0x3]
      %v370 = vld [vmem:[%s1 + $0x12] sm:$0x3]
      %v371 = vld [vmem:[%s1 + $0x14] sm:$0x3]
      %v372 = vld [vmem:[%s1 + $0x16] sm:$0x3]
      %v373 = vld [vmem:[%s1 + $0x18] sm:$0x3]
      %v374 = vld [vmem:[%s1 + $0x1a] sm:$0x3]
      %v375 = vld [vmem:[%s1 + $0x1c] sm:$0x3]
      %v376 = vld [vmem:[%s1 + $0x1e] sm:$0x3]
      %v377 = vld [vmem:[%s1 + $0x20] sm:$0x3]
      %v378 = vld [vmem:[%s1 + $0x22] sm:$0x3]
      %v379 = vld [vmem:[%s1 + $0x24] sm:$0x3]
      %v380 = vld [vmem:[%s1 + $0x26] sm:$0x3]
      %v381 = vld [vmem:[%s1 + $0x28] sm:$0x3]
      %v382 = vld [vmem:[%s1 + $0x2a] sm:$0x3]
      %v383 = vld [vmem:[%s1 + $0x2c] sm:$0x3]
      %v384 = vld [vmem:[%s1 + $0x2e] sm:$0x3]
      %v385 = vld [vmem:[%s1 + $0x30] sm:$0x3]
      %v386 = vld [vmem:[%s354] sm:$0xff]
      %v387 = vld [vmem:[%s354 + $0x8] sm:$0xff]
      %388 = vrot.lane.b32.xlu0 %v386, 34
      %v389 = vpop.permute.xlu0 %388
      %390 = vrot.lane.b32.xlu0 %v387, 34
      %v391 = vpop.permute.xlu0 %390
      %v392 = vlaneseq
      %v393 = vand.u32 %v392, 127
      %vm394 = vcmp.lt.s32.totalorder %v393, 34
      %v395 = vsel %vm394, %v389, %v391
      %v396 = vsel %vm394, %v391, %v389
      %v398 = vlaneseq
      %v399 = vshrl.u32 %v398, 7
      %v400 = vsub.s32 0, %v399
      %v401 = vrot.slane %v361, %v400
      %v402 = vlaneseq
      %v403 = vshrl.u32 %v402, 7
      %v404 = vsub.s32 1, %v403
      %v405 = vrot.slane %v361, %v404
      %v408 = vmul.f32 %v396, %v401
      %v409 = vmul.f32 %v395, %v405
      %410 = vrot.lane.b32.xlu0 %v386, 33
      %v411 = vpop.permute.xlu0 %410
      %412 = vrot.lane.b32.xlu0 %v387, 33
      %v413 = vpop.permute.xlu0 %412
      %vm414 = vcmp.lt.s32.totalorder %v393, 33
      %v415 = vsel %vm414, %v411, %v413
      %v416 = vsel %vm414, %v413, %v411
      %v418 = vlaneseq
      %v419 = vshrl.u32 %v418, 7
      %v420 = vsub.s32 0, %v419
      %v421 = vrot.slane %v362, %v420
      %v422 = vlaneseq
      %v423 = vshrl.u32 %v422, 7
      %v424 = vsub.s32 1, %v423
      %v425 = vrot.slane %v362, %v424
      %v428 = vmul.f32 %v416, %v421
      %v429 = vmul.f32 %v415, %v425
      %430 = vrot.lane.b32.xlu0 %v386, 32
      %v431 = vpop.permute.xlu0 %430
      %432 = vrot.lane.b32.xlu0 %v387, 32
      %v433 = vpop.permute.xlu0 %432
      %vm434 = vcmp.lt.s32.totalorder %v393, 32
      %v435 = vsel %vm434, %v431, %v433
      %v436 = vsel %vm434, %v433, %v431
      %v438 = vlaneseq
      %v439 = vshrl.u32 %v438, 7
      %v440 = vsub.s32 0, %v439
      %v441 = vrot.slane %v363, %v440
      %v442 = vlaneseq
      %v443 = vshrl.u32 %v442, 7
      %v444 = vsub.s32 1, %v443
      %v445 = vrot.slane %v363, %v444
      %v448 = vmul.f32 %v436, %v441
      %v449 = vmul.f32 %v435, %v445
      %450 = vrot.lane.b32.xlu0 %v386, 31
      %v451 = vpop.permute.xlu0 %450
      %452 = vrot.lane.b32.xlu0 %v387, 31
      %v453 = vpop.permute.xlu0 %452
      %vm454 = vcmp.lt.s32.totalorder %v393, 31
      %v455 = vsel %vm454, %v451, %v453
      %v456 = vsel %vm454, %v453, %v451
      %v458 = vlaneseq
      %v459 = vshrl.u32 %v458, 7
      %v460 = vsub.s32 0, %v459
      %v461 = vrot.slane %v364, %v460
      %v462 = vlaneseq
      %v463 = vshrl.u32 %v462, 7
      %v464 = vsub.s32 1, %v463
      %v465 = vrot.slane %v364, %v464
      %v468 = vmul.f32 %v456, %v461
      %v469 = vmul.f32 %v455, %v465
      %470 = vrot.lane.b32.xlu0 %v386, 30
      %v471 = vpop.permute.xlu0 %470
      %472 = vrot.lane.b32.xlu0 %v387, 30
      %v473 = vpop.permute.xlu0 %472
      %vm474 = vcmp.lt.s32.totalorder %v393, 30
      %v475 = vsel %vm474, %v471, %v473
      %v476 = vsel %vm474, %v473, %v471
      %v478 = vlaneseq
      %v479 = vshrl.u32 %v478, 7
      %v480 = vsub.s32 0, %v479
      %v481 = vrot.slane %v365, %v480
      %v482 = vlaneseq
      %v483 = vshrl.u32 %v482, 7
      %v484 = vsub.s32 1, %v483
      %v485 = vrot.slane %v365, %v484
      %v488 = vmul.f32 %v476, %v481
      %v489 = vmul.f32 %v475, %v485
      %490 = vrot.lane.b32.xlu0 %v386, 18
      %v491 = vpop.permute.xlu0 %490
      %492 = vrot.lane.b32.xlu0 %v387, 18
      %v493 = vpop.permute.xlu0 %492
      %vm494 = vcmp.lt.s32.totalorder %v393, 18
      %v495 = vsel %vm494, %v491, %v493
      %v496 = vsel %vm494, %v493, %v491
      %v498 = vlaneseq
      %v499 = vshrl.u32 %v498, 7
      %v500 = vsub.s32 0, %v499
      %v501 = vrot.slane %v366, %v500
      %v502 = vlaneseq
      %v503 = vshrl.u32 %v502, 7
      %v504 = vsub.s32 1, %v503
      %v505 = vrot.slane %v366, %v504
      %v508 = vmul.f32 %v496, %v501
      %v509 = vmul.f32 %v495, %v505
      %510 = vrot.lane.b32.xlu0 %v386, 17
      %v511 = vpop.permute.xlu0 %510
      %512 = vrot.lane.b32.xlu0 %v387, 17
      %v513 = vpop.permute.xlu0 %512
      %vm514 = vcmp.lt.s32.totalorder %v393, 17
      %v515 = vsel %vm514, %v511, %v513
      %v516 = vsel %vm514, %v513, %v511
      %v518 = vlaneseq
      %v519 = vshrl.u32 %v518, 7
      %v520 = vsub.s32 0, %v519
      %v521 = vrot.slane %v367, %v520
      %v522 = vlaneseq
      %v523 = vshrl.u32 %v522, 7
      %v524 = vsub.s32 1, %v523
      %v525 = vrot.slane %v367, %v524
      %v528 = vmul.f32 %v516, %v521
      %v529 = vmul.f32 %v515, %v525
      %530 = vrot.lane.b32.xlu0 %v386, 16
      %v531 = vpop.permute.xlu0 %530
      %532 = vrot.lane.b32.xlu0 %v387, 16
      %v533 = vpop.permute.xlu0 %532
      %vm534 = vcmp.lt.s32.totalorder %v393, 16
      %v535 = vsel %vm534, %v531, %v533
      %v536 = vsel %vm534, %v533, %v531
      %v538 = vlaneseq
      %v539 = vshrl.u32 %v538, 7
      %v540 = vsub.s32 0, %v539
      %v541 = vrot.slane %v368, %v540
      %v542 = vlaneseq
      %v543 = vshrl.u32 %v542, 7
      %v544 = vsub.s32 1, %v543
      %v545 = vrot.slane %v368, %v544
      %v548 = vmul.f32 %v536, %v541
      %v549 = vmul.f32 %v535, %v545
      %550 = vrot.lane.b32.xlu0 %v386, 15
      %v551 = vpop.permute.xlu0 %550
      %552 = vrot.lane.b32.xlu0 %v387, 15
      %v553 = vpop.permute.xlu0 %552
      %vm554 = vcmp.lt.s32.totalorder %v393, 15
      %v555 = vsel %vm554, %v551, %v553
      %v556 = vsel %vm554, %v553, %v551
      %v558 = vlaneseq
      %v559 = vshrl.u32 %v558, 7
      %v560 = vsub.s32 0, %v559
      %v561 = vrot.slane %v369, %v560
      %v562 = vlaneseq
      %v563 = vshrl.u32 %v562, 7
      %v564 = vsub.s32 1, %v563
      %v565 = vrot.slane %v369, %v564
      %v568 = vmul.f32 %v556, %v561
      %v569 = vmul.f32 %v555, %v565
      %570 = vrot.lane.b32.xlu0 %v386, 14
      %v571 = vpop.permute.xlu0 %570
      %572 = vrot.lane.b32.xlu0 %v387, 14
      %v573 = vpop.permute.xlu0 %572
      %vm574 = vcmp.lt.s32.totalorder %v393, 14
      %v575 = vsel %vm574, %v571, %v573
      %v576 = vsel %vm574, %v573, %v571
      %v578 = vlaneseq
      %v579 = vshrl.u32 %v578, 7
      %v580 = vsub.s32 0, %v579
      %v581 = vrot.slane %v370, %v580
      %v582 = vlaneseq
      %v583 = vshrl.u32 %v582, 7
      %v584 = vsub.s32 1, %v583
      %v585 = vrot.slane %v370, %v584
      %v588 = vmul.f32 %v576, %v581
      %v589 = vmul.f32 %v575, %v585
      %590 = vrot.lane.b32.xlu0 %v386, 2
      %v591 = vpop.permute.xlu0 %590
      %592 = vrot.lane.b32.xlu0 %v387, 2
      %v593 = vpop.permute.xlu0 %592
      %vm594 = vcmp.lt.s32.totalorder %v393, 2
      %v595 = vsel %vm594, %v591, %v593
      %v596 = vsel %vm594, %v593, %v591
      %v598 = vlaneseq
      %v599 = vshrl.u32 %v598, 7
      %v600 = vsub.s32 0, %v599
      %v601 = vrot.slane %v371, %v600
      %v602 = vlaneseq
      %v603 = vshrl.u32 %v602, 7
      %v604 = vsub.s32 1, %v603
      %v605 = vrot.slane %v371, %v604
      %v608 = vmul.f32 %v596, %v601
      %v609 = vmul.f32 %v595, %v605
      %610 = vrot.lane.b32.xlu0 %v386, 1
      %v611 = vpop.permute.xlu0 %610
      %612 = vrot.lane.b32.xlu0 %v387, 1
      %v613 = vpop.permute.xlu0 %612
      %vm614 = vcmp.lt.s32.totalorder %v393, 1
      %v615 = vsel %vm614, %v611, %v613
      %v616 = vsel %vm614, %v613, %v611
      %v618 = vlaneseq
      %v619 = vshrl.u32 %v618, 7
      %v620 = vsub.s32 0, %v619
      %v621 = vrot.slane %v372, %v620
      %v622 = vlaneseq
      %v623 = vshrl.u32 %v622, 7
      %v624 = vsub.s32 1, %v623
      %v625 = vrot.slane %v372, %v624
      %v628 = vmul.f32 %v616, %v621
      %v629 = vmul.f32 %v615, %v625
      %v631 = vlaneseq
      %v632 = vshrl.u32 %v631, 7
      %v633 = vsub.s32 0, %v632
      %v634 = vrot.slane %v373, %v633
      %v635 = vlaneseq
      %v636 = vshrl.u32 %v635, 7
      %v637 = vsub.s32 1, %v636
      %v638 = vrot.slane %v373, %v637
      %v641 = vmul.f32 %v386, %v634
      %v642 = vmul.f32 %v387, %v638
      %643 = vrot.lane.b32.xlu0 %v386, 127
      %v644 = vpop.permute.xlu0 %643
      %645 = vrot.lane.b32.xlu0 %v387, 127
      %v646 = vpop.permute.xlu0 %645
      %vm647 = vcmp.lt.s32.totalorder %v393, 127
      %v648 = vsel %vm647, %v644, %v646
      %v649 = vsel %vm647, %v646, %v644
      %v651 = vlaneseq
      %v652 = vshrl.u32 %v651, 7
      %v653 = vsub.s32 0, %v652
      %v654 = vrot.slane %v374, %v653
      %v655 = vlaneseq
      %v656 = vshrl.u32 %v655, 7
      %v657 = vsub.s32 1, %v656
      %v658 = vrot.slane %v374, %v657
      %v661 = vmul.f32 %v648, %v654
      %v662 = vmul.f32 %v649, %v658
      %663 = vrot.lane.b32.xlu0 %v386, 126
      %v664 = vpop.permute.xlu0 %663
      %665 = vrot.lane.b32.xlu0 %v387, 126
      %v666 = vpop.permute.xlu0 %665
      %vm667 = vcmp.lt.s32.totalorder %v393, 126
      %v668 = vsel %vm667, %v664, %v666
      %v669 = vsel %vm667, %v666, %v664
      %v671 = vlaneseq
      %v672 = vshrl.u32 %v671, 7
      %v673 = vsub.s32 0, %v672
      %v674 = vrot.slane %v375, %v673
      %v675 = vlaneseq
      %v676 = vshrl.u32 %v675, 7
      %v677 = vsub.s32 1, %v676
      %v678 = vrot.slane %v375, %v677
      %v681 = vmul.f32 %v668, %v674
      %v682 = vmul.f32 %v669, %v678
      %683 = vrot.lane.b32.xlu0 %v386, 114
      %v684 = vpop.permute.xlu0 %683
      %685 = vrot.lane.b32.xlu0 %v387, 114
      %v686 = vpop.permute.xlu0 %685
      %vm687 = vcmp.lt.s32.totalorder %v393, 114
      %v688 = vsel %vm687, %v684, %v686
      %v689 = vsel %vm687, %v686, %v684
      %v691 = vlaneseq
      %v692 = vshrl.u32 %v691, 7
      %v693 = vsub.s32 0, %v692
      %v694 = vrot.slane %v376, %v693
      %v695 = vlaneseq
      %v696 = vshrl.u32 %v695, 7
      %v697 = vsub.s32 1, %v696
      %v698 = vrot.slane %v376, %v697
      %v701 = vmul.f32 %v688, %v694
      %v702 = vmul.f32 %v689, %v698
      %703 = vrot.lane.b32.xlu0 %v386, 113
      %v704 = vpop.permute.xlu0 %703
      %705 = vrot.lane.b32.xlu0 %v387, 113
      %v706 = vpop.permute.xlu0 %705
      %vm707 = vcmp.lt.s32.totalorder %v393, 113
      %v708 = vsel %vm707, %v704, %v706
      %v709 = vsel %vm707, %v706, %v704
      %v711 = vlaneseq
      %v712 = vshrl.u32 %v711, 7
      %v713 = vsub.s32 0, %v712
      %v714 = vrot.slane %v377, %v713
      %v715 = vlaneseq
      %v716 = vshrl.u32 %v715, 7
      %v717 = vsub.s32 1, %v716
      %v718 = vrot.slane %v377, %v717
      %v721 = vmul.f32 %v708, %v714
      %v722 = vmul.f32 %v709, %v718
      %723 = vrot.lane.b32.xlu0 %v386, 112
      %v724 = vpop.permute.xlu0 %723
      %725 = vrot.lane.b32.xlu0 %v387, 112
      %v726 = vpop.permute.xlu0 %725
      %vm727 = vcmp.lt.s32.totalorder %v393, 112
      %v728 = vsel %vm727, %v724, %v726
      %v729 = vsel %vm727, %v726, %v724
      %v731 = vlaneseq
      %v732 = vshrl.u32 %v731, 7
      %v733 = vsub.s32 0, %v732
      %v734 = vrot.slane %v378, %v733
      %v735 = vlaneseq
      %v736 = vshrl.u32 %v735, 7
      %v737 = vsub.s32 1, %v736
      %v738 = vrot.slane %v378, %v737
      %v741 = vmul.f32 %v728, %v734
      %v742 = vmul.f32 %v729, %v738
      %743 = vrot.lane.b32.xlu0 %v386, 111
      %v744 = vpop.permute.xlu0 %743
      %745 = vrot.lane.b32.xlu0 %v387, 111
      %v746 = vpop.permute.xlu0 %745
      %vm747 = vcmp.lt.s32.totalorder %v393, 111
      %v748 = vsel %vm747, %v744, %v746
      %v749 = vsel %vm747, %v746, %v744
      %v751 = vlaneseq
      %v752 = vshrl.u32 %v751, 7
      %v753 = vsub.s32 0, %v752
      %v754 = vrot.slane %v379, %v753
      %v755 = vlaneseq
      %v756 = vshrl.u32 %v755, 7
      %v757 = vsub.s32 1, %v756
      %v758 = vrot.slane %v379, %v757
      %v761 = vmul.f32 %v748, %v754
      %v762 = vmul.f32 %v749, %v758
      %763 = vrot.lane.b32.xlu0 %v386, 110
      %v764 = vpop.permute.xlu0 %763
      %765 = vrot.lane.b32.xlu0 %v387, 110
      %v766 = vpop.permute.xlu0 %765
      %vm767 = vcmp.lt.s32.totalorder %v393, 110
      %v768 = vsel %vm767, %v764, %v766
      %v769 = vsel %vm767, %v766, %v764
      %v771 = vlaneseq
      %v772 = vshrl.u32 %v771, 7
      %v773 = vsub.s32 0, %v772
      %v774 = vrot.slane %v380, %v773
      %v775 = vlaneseq
      %v776 = vshrl.u32 %v775, 7
      %v777 = vsub.s32 1, %v776
      %v778 = vrot.slane %v380, %v777
      %v781 = vmul.f32 %v768, %v774
      %v782 = vmul.f32 %v769, %v778
      %783 = vrot.lane.b32.xlu0 %v386, 98
      %v784 = vpop.permute.xlu0 %783
      %785 = vrot.lane.b32.xlu0 %v387, 98
      %v786 = vpop.permute.xlu0 %785
      %vm787 = vcmp.lt.s32.totalorder %v393, 98
      %v788 = vsel %vm787, %v784, %v786
      %v789 = vsel %vm787, %v786, %v784
      %v791 = vlaneseq
      %v792 = vshrl.u32 %v791, 7
      %v793 = vsub.s32 0, %v792
      %v794 = vrot.slane %v381, %v793
      %v795 = vlaneseq
      %v796 = vshrl.u32 %v795, 7
      %v797 = vsub.s32 1, %v796
      %v798 = vrot.slane %v381, %v797
      %v801 = vmul.f32 %v788, %v794
      %v802 = vmul.f32 %v789, %v798
      %803 = vrot.lane.b32.xlu0 %v386, 97
      %v804 = vpop.permute.xlu0 %803
      %805 = vrot.lane.b32.xlu0 %v387, 97
      %v806 = vpop.permute.xlu0 %805
      %vm807 = vcmp.lt.s32.totalorder %v393, 97
      %v808 = vsel %vm807, %v804, %v806
      %v809 = vsel %vm807, %v806, %v804
      %v811 = vlaneseq
      %v812 = vshrl.u32 %v811, 7
      %v813 = vsub.s32 0, %v812
      %v814 = vrot.slane %v382, %v813
      %v815 = vlaneseq
      %v816 = vshrl.u32 %v815, 7
      %v817 = vsub.s32 1, %v816
      %v818 = vrot.slane %v382, %v817
      %v821 = vmul.f32 %v808, %v814
      %v822 = vmul.f32 %v809, %v818
      %823 = vrot.lane.b32.xlu0 %v386, 96
      %v824 = vpop.permute.xlu0 %823
      %825 = vrot.lane.b32.xlu0 %v387, 96
      %v826 = vpop.permute.xlu0 %825
      %vm827 = vcmp.lt.s32.totalorder %v393, 96
      %v828 = vsel %vm827, %v824, %v826
      %v829 = vsel %vm827, %v826, %v824
      %v831 = vlaneseq
      %v832 = vshrl.u32 %v831, 7
      %v833 = vsub.s32 0, %v832
      %v834 = vrot.slane %v383, %v833
      %v835 = vlaneseq
      %v836 = vshrl.u32 %v835, 7
      %v837 = vsub.s32 1, %v836
      %v838 = vrot.slane %v383, %v837
      %v841 = vmul.f32 %v828, %v834
      %v842 = vmul.f32 %v829, %v838
      %843 = vrot.lane.b32.xlu0 %v386, 95
      %v844 = vpop.permute.xlu0 %843
      %845 = vrot.lane.b32.xlu0 %v387, 95
      %v846 = vpop.permute.xlu0 %845
      %vm847 = vcmp.lt.s32.totalorder %v393, 95
      %v848 = vsel %vm847, %v844, %v846
      %v849 = vsel %vm847, %v846, %v844
      %v851 = vlaneseq
      %v852 = vshrl.u32 %v851, 7
      %v853 = vsub.s32 0, %v852
      %v854 = vrot.slane %v384, %v853
      %v855 = vlaneseq
      %v856 = vshrl.u32 %v855, 7
      %v857 = vsub.s32 1, %v856
      %v858 = vrot.slane %v384, %v857
      %v861 = vmul.f32 %v848, %v854
      %v862 = vmul.f32 %v849, %v858
      %863 = vrot.lane.b32.xlu0 %v386, 94
      %v864 = vpop.permute.xlu0 %863
      %865 = vrot.lane.b32.xlu0 %v387, 94
      %v866 = vpop.permute.xlu0 %865
      %vm867 = vcmp.lt.s32.totalorder %v393, 94
      %v868 = vsel %vm867, %v864, %v866
      %v869 = vsel %vm867, %v866, %v864
      %v871 = vlaneseq
      %v872 = vshrl.u32 %v871, 7
      %v873 = vsub.s32 0, %v872
      %v874 = vrot.slane %v385, %v873
      %v875 = vlaneseq
      %v876 = vshrl.u32 %v875, 7
      %v877 = vsub.s32 1, %v876
      %v878 = vrot.slane %v385, %v877
      %v881 = vmul.f32 %v868, %v874
      %v882 = vmul.f32 %v869, %v878
      %v883 = vld [vmem:[%s2] sm:$0xff]
      %v884 = vld [vmem:[%s2 + $0x8] sm:$0xff]
      %v885 = vpack.c.bf16 %v428, %v408
      %v886 = vpack.c.bf16 %v429, %v409
      %v887 = vpack.c.bf16 %v468, %v448
      %v888 = vpack.c.bf16 %v469, %v449
      %v889 = vpack.c.bf16 %v508, %v488
      %v890 = vpack.c.bf16 %v509, %v489
      %v891 = vpack.c.bf16 %v548, %v528
      %v892 = vpack.c.bf16 %v549, %v529
      %v893 = vpack.c.bf16 %v588, %v568
      %v894 = vpack.c.bf16 %v589, %v569
      %v895 = vpack.c.bf16 %v628, %v608
      %v896 = vpack.c.bf16 %v629, %v609
      %v897 = vpack.c.bf16 %v661, %v641
      %v898 = vpack.c.bf16 %v662, %v642
      %v899 = vpack.c.bf16 %v701, %v681
      %v900 = vpack.c.bf16 %v702, %v682
      %v901 = vpack.c.bf16 %v741, %v721
      %v902 = vpack.c.bf16 %v742, %v722
      %v903 = vpack.c.bf16 %v781, %v761
      %v904 = vpack.c.bf16 %v782, %v762
      %v905 = vpack.c.bf16 %v821, %v801
      %v906 = vpack.c.bf16 %v822, %v802
      %v907 = vpack.c.bf16 %v861, %v841
      %v908 = vpack.c.bf16 %v862, %v842
      %v909 = vpack.c.bf16 %v881, %v881
      %v910 = vpack.c.bf16 %v882, %v882
      %v913 = vunpack.c.l.b16 %v883
      %v914 = vunpack.c.h.b16 %v883
      %v915 = vunpack.c.l.b16 %v884
      %v916 = vunpack.c.h.b16 %v884
      %v917 = vpack.c.b16 %v915, %v913
      %v918 = vpack.c.b16 %v916, %v914
      %vm920 = vcmask 588800
      %v922 = vsel %vm920, %v918, 0
      %vm924 = vcmask 1043456
      %v926 = vsel %vm924, %v909, 0
      %v929 = vsel %vm924, %v910, 0
      %931 = vmatprep.subr.bf16.mxu0 %v886
      %932 = vmatpush1.bf16.msra.mxu0 %v885
      %933 = vmatprep.subr.bf16.mxu0 %v888
      %934 = vmatpush1.bf16.msra.mxu0 %v887
      %935 = vmatprep.subr.bf16.mxu0 %v890
      %936 = vmatpush1.bf16.msra.mxu0 %v889
      %937 = vmatprep.subr.bf16.mxu0 %v892
      %938 = vmatpush1.bf16.msra.mxu0 %v891
      %939 = vmatprep.subr.bf16.mxu0 %v894
      %940 = vmatpush1.bf16.msra.mxu0 %v893
      %941 = vmatprep.subr.bf16.mxu0 %v896
      %942 = vmatpush1.bf16.msra.mxu0 %v895
      %943 = vmatprep.subr.bf16.mxu0 %v898
      %944 = vmatpush1.bf16.msra.mxu0 %v897
      %945 = vmatprep.subr.bf16.mxu0 %v900
      %946 = vmatpush1.bf16.msra.mxu0 %v899
      %947 = vmatprep.subr.bf16.mxu0 %v902
      %948 = vmatpush1.bf16.msra.mxu0 %v901
      %949 = vmatprep.subr.bf16.mxu0 %v904
      %950 = vmatpush1.bf16.msra.mxu0 %v903
      %951 = vmatprep.subr.bf16.mxu0 %v906
      %952 = vmatpush1.bf16.msra.mxu0 %v905
      %953 = vmatprep.subr.bf16.mxu0 %v908
      %954 = vmatpush1.bf16.msra.mxu0 %v907
      %955 = vmatprep.subr.bf16.mxu0 %v929
      %956 = vmatpush1.bf16.msra.mxu0 %v926
      %957 = vmatprep.subr.bf16.mxu0 0
      %958 = vmatpush1.bf16.msra.mxu0 0
      %959 = vmatprep.subr.bf16.mxu0 0
      %960 = vmatpush1.bf16.msra.mxu0 0
      %961 = vmatprep.subr.bf16.mxu0 0
      %962 = vmatpush1.bf16.msra.mxu0 0
      %963 = vmatprep.mubr.bf16.mxu0 %v922
      %964 = vmatmul.mubr.bf16.gmra.mrb[0].mxu0 %v917
      %v965 = vpop.f32.mrb[0].mxu0
      %v966 = vadd.f32 0.0, %v965
      %v967 = vpop.f32.mrb[0].mxu0
      %v968 = vadd.f32 0.0, %v967
      %v969 = vpop.f32.mrb[0].mxu0
      %v970 = vadd.f32 0.0, %v969
      %v971 = vpop.f32.mrb[0].mxu0
      %v972 = vadd.f32 0.0, %v971
      %973 = vdwg.mxu0
      %v974 = vmax.f32 %v966, 0.0
      %v975 = vmax.f32 %v968, 0.0
      %v976 = vmax.f32 %v970, 0.0
      %v977 = vmax.f32 %v972, 0.0
      %v978 = vld [vmem:[%s3] sm:$0xff]
      %v979 = vld [vmem:[%s3 + $0x8] sm:$0xff]
      %981 = vset.pattern.permute.xlu0 0
      %982 = vperm.xlu0 %981, %v978
      %v983 = vpop.permute.xlu0 %982
      %986 = vset.pattern.permute.xlu0 0
      %987 = vperm.xlu0 %986, %v979
      %v988 = vpop.permute.xlu0 %987
      %v990 = vmul.f32 %v974, %v983
      %v991 = vmul.f32 %v975, %v983
      %v992 = vmul.f32 %v976, %v988
      %v993 = vmul.f32 %v977, %v988
      %994 = vrot.lane.b32.xlu0 %v990, 34
      %v995 = vpop.permute.xlu0 %994
      %996 = vrot.lane.b32.xlu0 %v992, 34
      %v997 = vpop.permute.xlu0 %996
      %998 = vrot.lane.b32.xlu0 %v991, 34
      %v999 = vpop.permute.xlu0 %998
      %1000 = vrot.lane.b32.xlu0 %v993, 34
      %v1001 = vpop.permute.xlu0 %1000
      %v1002 = vsel %vm394, %v995, %v999
      %v1003 = vsel %vm394, %v997, %v1001
      %v1004 = vsel %vm394, %v999, %v995
      %v1005 = vsel %vm394, %v1001, %v997
      %v1006 = vmul.f32 %v1004, %v401
      %v1007 = vmul.f32 %v1002, %v405
      %v1008 = vmul.f32 %v1005, %v401
      %v1009 = vmul.f32 %v1003, %v405
      %1010 = vrot.lane.b32.xlu0 %v990, 33
      %v1011 = vpop.permute.xlu0 %1010
      %1012 = vrot.lane.b32.xlu0 %v992, 33
      %v1013 = vpop.permute.xlu0 %1012
      %1014 = vrot.lane.b32.xlu0 %v991, 33
      %v1015 = vpop.permute.xlu0 %1014
      %1016 = vrot.lane.b32.xlu0 %v993, 33
      %v1017 = vpop.permute.xlu0 %1016
      %v1018 = vsel %vm414, %v1011, %v1015
      %v1019 = vsel %vm414, %v1013, %v1017
      %v1020 = vsel %vm414, %v1015, %v1011
      %v1021 = vsel %vm414, %v1017, %v1013
      %v1022 = vmul.f32 %v1020, %v421
      %v1023 = vmul.f32 %v1018, %v425
      %v1024 = vmul.f32 %v1021, %v421
      %v1025 = vmul.f32 %v1019, %v425
      %1026 = vrot.lane.b32.xlu0 %v990, 32
      %v1027 = vpop.permute.xlu0 %1026
      %1028 = vrot.lane.b32.xlu0 %v992, 32
      %v1029 = vpop.permute.xlu0 %1028
      %1030 = vrot.lane.b32.xlu0 %v991, 32
      %v1031 = vpop.permute.xlu0 %1030
      %1032 = vrot.lane.b32.xlu0 %v993, 32
      %v1033 = vpop.permute.xlu0 %1032
      %v1034 = vsel %vm434, %v1027, %v1031
      %v1035 = vsel %vm434, %v1029, %v1033
      %v1036 = vsel %vm434, %v1031, %v1027
      %v1037 = vsel %vm434, %v1033, %v1029
      %v1038 = vmul.f32 %v1036, %v441
      %v1039 = vmul.f32 %v1034, %v445
      %v1040 = vmul.f32 %v1037, %v441
      %v1041 = vmul.f32 %v1035, %v445
      %1042 = vrot.lane.b32.xlu0 %v990, 31
      %v1043 = vpop.permute.xlu0 %1042
      %1044 = vrot.lane.b32.xlu0 %v992, 31
      %v1045 = vpop.permute.xlu0 %1044
      %1046 = vrot.lane.b32.xlu0 %v991, 31
      %v1047 = vpop.permute.xlu0 %1046
      %1048 = vrot.lane.b32.xlu0 %v993, 31
      %v1049 = vpop.permute.xlu0 %1048
      %v1050 = vsel %vm454, %v1043, %v1047
      %v1051 = vsel %vm454, %v1045, %v1049
      %v1052 = vsel %vm454, %v1047, %v1043
      %v1053 = vsel %vm454, %v1049, %v1045
      %v1054 = vmul.f32 %v1052, %v461
      %v1055 = vmul.f32 %v1050, %v465
      %v1056 = vmul.f32 %v1053, %v461
      %v1057 = vmul.f32 %v1051, %v465
      %1058 = vrot.lane.b32.xlu0 %v990, 30
      %v1059 = vpop.permute.xlu0 %1058
      %1060 = vrot.lane.b32.xlu0 %v992, 30
      %v1061 = vpop.permute.xlu0 %1060
      %1062 = vrot.lane.b32.xlu0 %v991, 30
      %v1063 = vpop.permute.xlu0 %1062
      %1064 = vrot.lane.b32.xlu0 %v993, 30
      %v1065 = vpop.permute.xlu0 %1064
      %v1066 = vsel %vm474, %v1059, %v1063
      %v1067 = vsel %vm474, %v1061, %v1065
      %v1068 = vsel %vm474, %v1063, %v1059
      %v1069 = vsel %vm474, %v1065, %v1061
      %v1070 = vmul.f32 %v1068, %v481
      %v1071 = vmul.f32 %v1066, %v485
      %v1072 = vmul.f32 %v1069, %v481
      %v1073 = vmul.f32 %v1067, %v485
      %1074 = vrot.lane.b32.xlu0 %v990, 18
      %v1075 = vpop.permute.xlu0 %1074
      %1076 = vrot.lane.b32.xlu0 %v992, 18
      %v1077 = vpop.permute.xlu0 %1076
      %1078 = vrot.lane.b32.xlu0 %v991, 18
      %v1079 = vpop.permute.xlu0 %1078
      %1080 = vrot.lane.b32.xlu0 %v993, 18
      %v1081 = vpop.permute.xlu0 %1080
      %v1082 = vsel %vm494, %v1075, %v1079
      %v1083 = vsel %vm494, %v1077, %v1081
      %v1084 = vsel %vm494, %v1079, %v1075
      %v1085 = vsel %vm494, %v1081, %v1077
      %v1086 = vmul.f32 %v1084, %v501
      %v1087 = vmul.f32 %v1082, %v505
      %v1088 = vmul.f32 %v1085, %v501
      %v1089 = vmul.f32 %v1083, %v505
      %1090 = vrot.lane.b32.xlu0 %v990, 17
      %v1091 = vpop.permute.xlu0 %1090
      %1092 = vrot.lane.b32.xlu0 %v992, 17
      %v1093 = vpop.permute.xlu0 %1092
      %1094 = vrot.lane.b32.xlu0 %v991, 17
      %v1095 = vpop.permute.xlu0 %1094
      %1096 = vrot.lane.b32.xlu0 %v993, 17
      %v1097 = vpop.permute.xlu0 %1096
      %v1098 = vsel %vm514, %v1091, %v1095
      %v1099 = vsel %vm514, %v1093, %v1097
      %v1100 = vsel %vm514, %v1095, %v1091
      %v1101 = vsel %vm514, %v1097, %v1093
      %v1102 = vmul.f32 %v1100, %v521
      %v1103 = vmul.f32 %v1098, %v525
      %v1104 = vmul.f32 %v1101, %v521
      %v1105 = vmul.f32 %v1099, %v525
      %1106 = vrot.lane.b32.xlu0 %v990, 16
      %v1107 = vpop.permute.xlu0 %1106
      %1108 = vrot.lane.b32.xlu0 %v992, 16
      %v1109 = vpop.permute.xlu0 %1108
      %1110 = vrot.lane.b32.xlu0 %v991, 16
      %v1111 = vpop.permute.xlu0 %1110
      %1112 = vrot.lane.b32.xlu0 %v993, 16
      %v1113 = vpop.permute.xlu0 %1112
      %v1114 = vsel %vm534, %v1107, %v1111
      %v1115 = vsel %vm534, %v1109, %v1113
      %v1116 = vsel %vm534, %v1111, %v1107
      %v1117 = vsel %vm534, %v1113, %v1109
      %v1118 = vmul.f32 %v1116, %v541
      %v1119 = vmul.f32 %v1114, %v545
      %v1120 = vmul.f32 %v1117, %v541
      %v1121 = vmul.f32 %v1115, %v545
      %1122 = vrot.lane.b32.xlu0 %v990, 15
      %v1123 = vpop.permute.xlu0 %1122
      %1124 = vrot.lane.b32.xlu0 %v992, 15
      %v1125 = vpop.permute.xlu0 %1124
      %1126 = vrot.lane.b32.xlu0 %v991, 15
      %v1127 = vpop.permute.xlu0 %1126
      %1128 = vrot.lane.b32.xlu0 %v993, 15
      %v1129 = vpop.permute.xlu0 %1128
      %v1130 = vsel %vm554, %v1123, %v1127
      %v1131 = vsel %vm554, %v1125, %v1129
      %v1132 = vsel %vm554, %v1127, %v1123
      %v1133 = vsel %vm554, %v1129, %v1125
      %v1134 = vmul.f32 %v1132, %v561
      %v1135 = vmul.f32 %v1130, %v565
      %v1136 = vmul.f32 %v1133, %v561
      %v1137 = vmul.f32 %v1131, %v565
      %1138 = vrot.lane.b32.xlu0 %v990, 14
      %v1139 = vpop.permute.xlu0 %1138
      %1140 = vrot.lane.b32.xlu0 %v992, 14
      %v1141 = vpop.permute.xlu0 %1140
      %1142 = vrot.lane.b32.xlu0 %v991, 14
      %v1143 = vpop.permute.xlu0 %1142
      %1144 = vrot.lane.b32.xlu0 %v993, 14
      %v1145 = vpop.permute.xlu0 %1144
      %v1146 = vsel %vm574, %v1139, %v1143
      %v1147 = vsel %vm574, %v1141, %v1145
      %v1148 = vsel %vm574, %v1143, %v1139
      %v1149 = vsel %vm574, %v1145, %v1141
      %v1150 = vmul.f32 %v1148, %v581
      %v1151 = vmul.f32 %v1146, %v585
      %v1152 = vmul.f32 %v1149, %v581
      %v1153 = vmul.f32 %v1147, %v585
      %1154 = vrot.lane.b32.xlu0 %v990, 2
      %v1155 = vpop.permute.xlu0 %1154
      %1156 = vrot.lane.b32.xlu0 %v992, 2
      %v1157 = vpop.permute.xlu0 %1156
      %1158 = vrot.lane.b32.xlu0 %v991, 2
      %v1159 = vpop.permute.xlu0 %1158
      %1160 = vrot.lane.b32.xlu0 %v993, 2
      %v1161 = vpop.permute.xlu0 %1160
      %v1162 = vsel %vm594, %v1155, %v1159
      %v1163 = vsel %vm594, %v1157, %v1161
      %v1164 = vsel %vm594, %v1159, %v1155
      %v1165 = vsel %vm594, %v1161, %v1157
      %v1166 = vmul.f32 %v1164, %v601
      %v1167 = vmul.f32 %v1162, %v605
      %v1168 = vmul.f32 %v1165, %v601
      %v1169 = vmul.f32 %v1163, %v605
      %1170 = vrot.lane.b32.xlu0 %v990, 1
      %v1171 = vpop.permute.xlu0 %1170
      %1172 = vrot.lane.b32.xlu0 %v992, 1
      %v1173 = vpop.permute.xlu0 %1172
      %1174 = vrot.lane.b32.xlu0 %v991, 1
      %v1175 = vpop.permute.xlu0 %1174
      %1176 = vrot.lane.b32.xlu0 %v993, 1
      %v1177 = vpop.permute.xlu0 %1176
      %v1178 = vsel %vm614, %v1171, %v1175
      %v1179 = vsel %vm614, %v1173, %v1177
      %v1180 = vsel %vm614, %v1175, %v1171
      %v1181 = vsel %vm614, %v1177, %v1173
      %v1182 = vmul.f32 %v1180, %v621
      %v1183 = vmul.f32 %v1178, %v625
      %v1184 = vmul.f32 %v1181, %v621
      %v1185 = vmul.f32 %v1179, %v625
      %v1186 = vmul.f32 %v990, %v634
      %v1187 = vmul.f32 %v991, %v638
      %v1188 = vmul.f32 %v992, %v634
      %v1189 = vmul.f32 %v993, %v638
      %1190 = vrot.lane.b32.xlu0 %v990, 127
      %v1191 = vpop.permute.xlu0 %1190
      %1192 = vrot.lane.b32.xlu0 %v992, 127
      %v1193 = vpop.permute.xlu0 %1192
      %1194 = vrot.lane.b32.xlu0 %v991, 127
      %v1195 = vpop.permute.xlu0 %1194
      %1196 = vrot.lane.b32.xlu0 %v993, 127
      %v1197 = vpop.permute.xlu0 %1196
      %v1198 = vsel %vm647, %v1191, %v1195
      %v1199 = vsel %vm647, %v1193, %v1197
      %v1200 = vsel %vm647, %v1195, %v1191
      %v1201 = vsel %vm647, %v1197, %v1193
      %v1202 = vmul.f32 %v1198, %v654
      %v1203 = vmul.f32 %v1200, %v658
      %v1204 = vmul.f32 %v1199, %v654
      %v1205 = vmul.f32 %v1201, %v658
      %1206 = vrot.lane.b32.xlu0 %v990, 126
      %v1207 = vpop.permute.xlu0 %1206
      %1208 = vrot.lane.b32.xlu0 %v992, 126
      %v1209 = vpop.permute.xlu0 %1208
      %1210 = vrot.lane.b32.xlu0 %v991, 126
      %v1211 = vpop.permute.xlu0 %1210
      %1212 = vrot.lane.b32.xlu0 %v993, 126
      %v1213 = vpop.permute.xlu0 %1212
      %v1214 = vsel %vm667, %v1207, %v1211
      %v1215 = vsel %vm667, %v1209, %v1213
      %v1216 = vsel %vm667, %v1211, %v1207
      %v1217 = vsel %vm667, %v1213, %v1209
      %v1218 = vmul.f32 %v1214, %v674
      %v1219 = vmul.f32 %v1216, %v678
      %v1220 = vmul.f32 %v1215, %v674
      %v1221 = vmul.f32 %v1217, %v678
      %1222 = vrot.lane.b32.xlu0 %v990, 114
      %v1223 = vpop.permute.xlu0 %1222
      %1224 = vrot.lane.b32.xlu0 %v992, 114
      %v1225 = vpop.permute.xlu0 %1224
      %1226 = vrot.lane.b32.xlu0 %v991, 114
      %v1227 = vpop.permute.xlu0 %1226
      %1228 = vrot.lane.b32.xlu0 %v993, 114
      %v1229 = vpop.permute.xlu0 %1228
      %v1230 = vsel %vm687, %v1223, %v1227
      %v1231 = vsel %vm687, %v1225, %v1229
      %v1232 = vsel %vm687, %v1227, %v1223
      %v1233 = vsel %vm687, %v1229, %v1225
      %v1234 = vmul.f32 %v1230, %v694
      %v1235 = vmul.f32 %v1232, %v698
      %v1236 = vmul.f32 %v1231, %v694
      %v1237 = vmul.f32 %v1233, %v698
      %1238 = vrot.lane.b32.xlu0 %v990, 113
      %v1239 = vpop.permute.xlu0 %1238
      %1240 = vrot.lane.b32.xlu0 %v992, 113
      %v1241 = vpop.permute.xlu0 %1240
      %1242 = vrot.lane.b32.xlu0 %v991, 113
      %v1243 = vpop.permute.xlu0 %1242
      %1244 = vrot.lane.b32.xlu0 %v993, 113
      %v1245 = vpop.permute.xlu0 %1244
      %v1246 = vsel %vm707, %v1239, %v1243
      %v1247 = vsel %vm707, %v1241, %v1245
      %v1248 = vsel %vm707, %v1243, %v1239
      %v1249 = vsel %vm707, %v1245, %v1241
      %v1250 = vmul.f32 %v1246, %v714
      %v1251 = vmul.f32 %v1248, %v718
      %v1252 = vmul.f32 %v1247, %v714
      %v1253 = vmul.f32 %v1249, %v718
      %1254 = vrot.lane.b32.xlu0 %v990, 112
      %v1255 = vpop.permute.xlu0 %1254
      %1256 = vrot.lane.b32.xlu0 %v992, 112
      %v1257 = vpop.permute.xlu0 %1256
      %1258 = vrot.lane.b32.xlu0 %v991, 112
      %v1259 = vpop.permute.xlu0 %1258
      %1260 = vrot.lane.b32.xlu0 %v993, 112
      %v1261 = vpop.permute.xlu0 %1260
      %v1262 = vsel %vm727, %v1255, %v1259
      %v1263 = vsel %vm727, %v1257, %v1261
      %v1264 = vsel %vm727, %v1259, %v1255
      %v1265 = vsel %vm727, %v1261, %v1257
      %v1266 = vmul.f32 %v1262, %v734
      %v1267 = vmul.f32 %v1264, %v738
      %v1268 = vmul.f32 %v1263, %v734
      %v1269 = vmul.f32 %v1265, %v738
      %1270 = vrot.lane.b32.xlu0 %v990, 111
      %v1271 = vpop.permute.xlu0 %1270
      %1272 = vrot.lane.b32.xlu0 %v992, 111
      %v1273 = vpop.permute.xlu0 %1272
      %1274 = vrot.lane.b32.xlu0 %v991, 111
      %v1275 = vpop.permute.xlu0 %1274
      %1276 = vrot.lane.b32.xlu0 %v993, 111
      %v1277 = vpop.permute.xlu0 %1276
      %v1278 = vsel %vm747, %v1271, %v1275
      %v1279 = vsel %vm747, %v1273, %v1277
      %v1280 = vsel %vm747, %v1275, %v1271
      %v1281 = vsel %vm747, %v1277, %v1273
      %v1282 = vmul.f32 %v1278, %v754
      %v1283 = vmul.f32 %v1280, %v758
      %v1284 = vmul.f32 %v1279, %v754
      %v1285 = vmul.f32 %v1281, %v758
      %1286 = vrot.lane.b32.xlu0 %v990, 110
      %v1287 = vpop.permute.xlu0 %1286
      %1288 = vrot.lane.b32.xlu0 %v992, 110
      %v1289 = vpop.permute.xlu0 %1288
      %1290 = vrot.lane.b32.xlu0 %v991, 110
      %v1291 = vpop.permute.xlu0 %1290
      %1292 = vrot.lane.b32.xlu0 %v993, 110
      %v1293 = vpop.permute.xlu0 %1292
      %v1294 = vsel %vm767, %v1287, %v1291
      %v1295 = vsel %vm767, %v1289, %v1293
      %v1296 = vsel %vm767, %v1291, %v1287
      %v1297 = vsel %vm767, %v1293, %v1289
      %v1298 = vmul.f32 %v1294, %v774
      %v1299 = vmul.f32 %v1296, %v778
      %v1300 = vmul.f32 %v1295, %v774
      %v1301 = vmul.f32 %v1297, %v778
      %1302 = vrot.lane.b32.xlu0 %v990, 98
      %v1303 = vpop.permute.xlu0 %1302
      %1304 = vrot.lane.b32.xlu0 %v992, 98
      %v1305 = vpop.permute.xlu0 %1304
      %1306 = vrot.lane.b32.xlu0 %v991, 98
      %v1307 = vpop.permute.xlu0 %1306
      %1308 = vrot.lane.b32.xlu0 %v993, 98
      %v1309 = vpop.permute.xlu0 %1308
      %v1310 = vsel %vm787, %v1303, %v1307
      %v1311 = vsel %vm787, %v1305, %v1309
      %v1312 = vsel %vm787, %v1307, %v1303
      %v1313 = vsel %vm787, %v1309, %v1305
      %v1314 = vmul.f32 %v1310, %v794
      %v1315 = vmul.f32 %v1312, %v798
      %v1316 = vmul.f32 %v1311, %v794
      %v1317 = vmul.f32 %v1313, %v798
      %1318 = vrot.lane.b32.xlu0 %v990, 97
      %v1319 = vpop.permute.xlu0 %1318
      %1320 = vrot.lane.b32.xlu0 %v992, 97
      %v1321 = vpop.permute.xlu0 %1320
      %1322 = vrot.lane.b32.xlu0 %v991, 97
      %v1323 = vpop.permute.xlu0 %1322
      %1324 = vrot.lane.b32.xlu0 %v993, 97
      %v1325 = vpop.permute.xlu0 %1324
      %v1326 = vsel %vm807, %v1319, %v1323
      %v1327 = vsel %vm807, %v1321, %v1325
      %v1328 = vsel %vm807, %v1323, %v1319
      %v1329 = vsel %vm807, %v1325, %v1321
      %v1330 = vmul.f32 %v1326, %v814
      %v1331 = vmul.f32 %v1328, %v818
      %v1332 = vmul.f32 %v1327, %v814
      %v1333 = vmul.f32 %v1329, %v818
      %1334 = vrot.lane.b32.xlu0 %v990, 96
      %v1335 = vpop.permute.xlu0 %1334
      %1336 = vrot.lane.b32.xlu0 %v992, 96
      %v1337 = vpop.permute.xlu0 %1336
      %1338 = vrot.lane.b32.xlu0 %v991, 96
      %v1339 = vpop.permute.xlu0 %1338
      %1340 = vrot.lane.b32.xlu0 %v993, 96
      %v1341 = vpop.permute.xlu0 %1340
      %v1342 = vsel %vm827, %v1335, %v1339
      %v1343 = vsel %vm827, %v1337, %v1341
      %v1344 = vsel %vm827, %v1339, %v1335
      %v1345 = vsel %vm827, %v1341, %v1337
      %v1346 = vmul.f32 %v1342, %v834
      %v1347 = vmul.f32 %v1344, %v838
      %v1348 = vmul.f32 %v1343, %v834
      %v1349 = vmul.f32 %v1345, %v838
      %1350 = vrot.lane.b32.xlu0 %v990, 95
      %v1351 = vpop.permute.xlu0 %1350
      %1352 = vrot.lane.b32.xlu0 %v992, 95
      %v1353 = vpop.permute.xlu0 %1352
      %1354 = vrot.lane.b32.xlu0 %v991, 95
      %v1355 = vpop.permute.xlu0 %1354
      %1356 = vrot.lane.b32.xlu0 %v993, 95
      %v1357 = vpop.permute.xlu0 %1356
      %v1358 = vsel %vm847, %v1351, %v1355
      %v1359 = vsel %vm847, %v1353, %v1357
      %v1360 = vsel %vm847, %v1355, %v1351
      %v1361 = vsel %vm847, %v1357, %v1353
      %v1362 = vmul.f32 %v1358, %v854
      %v1363 = vmul.f32 %v1360, %v858
      %v1364 = vmul.f32 %v1359, %v854
      %v1365 = vmul.f32 %v1361, %v858
      %1366 = vrot.lane.b32.xlu0 %v990, 94
      %v1367 = vpop.permute.xlu0 %1366
      %1368 = vrot.lane.b32.xlu0 %v992, 94
      %v1369 = vpop.permute.xlu0 %1368
      %1370 = vrot.lane.b32.xlu0 %v991, 94
      %v1371 = vpop.permute.xlu0 %1370
      %1372 = vrot.lane.b32.xlu0 %v993, 94
      %v1373 = vpop.permute.xlu0 %1372
      %v1374 = vsel %vm867, %v1367, %v1371
      %v1375 = vsel %vm867, %v1369, %v1373
      %v1376 = vsel %vm867, %v1371, %v1367
      %v1377 = vsel %vm867, %v1373, %v1369
      %v1378 = vmul.f32 %v1374, %v874
      %v1379 = vmul.f32 %v1376, %v878
      %v1380 = vmul.f32 %v1375, %v874
      %v1381 = vmul.f32 %v1377, %v878
      %v1382 = vld [vmem:[%s4] sm:$0xff]
      %v1383 = vld [vmem:[%s4 + $0x8] sm:$0xff]
      %v1384 = vld [vmem:[%s4 + $0x10] sm:$0xff]
      %v1385 = vld [vmem:[%s4 + $0x18] sm:$0xff]
      %v1386 = vld [vmem:[%s4 + $0x20] sm:$0xff]
      %v1387 = vld [vmem:[%s4 + $0x28] sm:$0xff]
      %v1388 = vpack.c.bf16 %v1008, %v1006
      %v1389 = vpack.c.bf16 %v1009, %v1007
      %v1390 = vpack.c.bf16 %v1024, %v1022
      %v1391 = vpack.c.bf16 %v1025, %v1023
      %v1392 = vpack.c.bf16 %v1040, %v1038
      %v1393 = vpack.c.bf16 %v1041, %v1039
      %v1394 = vpack.c.bf16 %v1056, %v1054
      %v1395 = vpack.c.bf16 %v1057, %v1055
      %v1396 = vpack.c.bf16 %v1072, %v1070
      %v1397 = vpack.c.bf16 %v1073, %v1071
      %v1398 = vpack.c.bf16 %v1088, %v1086
      %v1399 = vpack.c.bf16 %v1089, %v1087
      %v1400 = vpack.c.bf16 %v1104, %v1102
      %v1401 = vpack.c.bf16 %v1105, %v1103
      %v1402 = vpack.c.bf16 %v1120, %v1118
      %v1403 = vpack.c.bf16 %v1121, %v1119
      %v1404 = vpack.c.bf16 %v1136, %v1134
      %v1405 = vpack.c.bf16 %v1137, %v1135
      %v1406 = vpack.c.bf16 %v1152, %v1150
      %v1407 = vpack.c.bf16 %v1153, %v1151
      %v1408 = vpack.c.bf16 %v1168, %v1166
      %v1409 = vpack.c.bf16 %v1169, %v1167
      %v1410 = vpack.c.bf16 %v1184, %v1182
      %v1411 = vpack.c.bf16 %v1185, %v1183
      %v1412 = vpack.c.bf16 %v1188, %v1186
      %v1413 = vpack.c.bf16 %v1189, %v1187
      %v1414 = vpack.c.bf16 %v1204, %v1202
      %v1415 = vpack.c.bf16 %v1205, %v1203
      %v1416 = vpack.c.bf16 %v1220, %v1218
      %v1417 = vpack.c.bf16 %v1221, %v1219
      %v1418 = vpack.c.bf16 %v1236, %v1234
      %v1419 = vpack.c.bf16 %v1237, %v1235
      %v1420 = vpack.c.bf16 %v1252, %v1250
      %v1421 = vpack.c.bf16 %v1253, %v1251
      %v1422 = vpack.c.bf16 %v1268, %v1266
      %v1423 = vpack.c.bf16 %v1269, %v1267
      %v1424 = vpack.c.bf16 %v1284, %v1282
      %v1425 = vpack.c.bf16 %v1285, %v1283
      %v1426 = vpack.c.bf16 %v1300, %v1298
      %v1427 = vpack.c.bf16 %v1301, %v1299
      %v1428 = vpack.c.bf16 %v1316, %v1314
      %v1429 = vpack.c.bf16 %v1317, %v1315
      %v1430 = vpack.c.bf16 %v1332, %v1330
      %v1431 = vpack.c.bf16 %v1333, %v1331
      %v1432 = vpack.c.bf16 %v1348, %v1346
      %v1433 = vpack.c.bf16 %v1349, %v1347
      %v1434 = vpack.c.bf16 %v1364, %v1362
      %v1435 = vpack.c.bf16 %v1365, %v1363
      %v1436 = vpack.c.bf16 %v1380, %v1378
      %v1437 = vpack.c.bf16 %v1381, %v1379
      %v1444 = vunpack.c.l.b16 %v1382
      %v1445 = vunpack.c.h.b16 %v1382
      %v1446 = vunpack.c.l.b16 %v1383
      %v1447 = vunpack.c.h.b16 %v1383
      %v1448 = vunpack.c.l.b16 %v1384
      %v1449 = vunpack.c.h.b16 %v1384
      %v1450 = vunpack.c.l.b16 %v1385
      %v1451 = vunpack.c.h.b16 %v1385
      %v1452 = vunpack.c.l.b16 %v1386
      %v1453 = vunpack.c.h.b16 %v1386
      %v1454 = vunpack.c.l.b16 %v1387
      %v1455 = vunpack.c.h.b16 %v1387
      %v1456 = vpack.c.b16 %v1448, %v1444
      %v1457 = vpack.c.b16 %v1449, %v1445
      %v1458 = vpack.c.b16 %v1450, %v1446
      %v1459 = vpack.c.b16 %v1451, %v1447
      %v1460 = vpack.c.b16 %v1452, %v1452
      %v1461 = vpack.c.b16 %v1453, %v1453
      %v1462 = vpack.c.b16 %v1454, %v1454
      %v1463 = vpack.c.b16 %v1455, %v1455
      %vm1470 = vcmask 130048
      %v1472 = vsel %vm1470, %v1459, 0
      %v1475 = vsel %vm1470, %v1463, 0
      %1477 = vmatprep.subr.bf16.mxu0 %v1389
      %1478 = vmatpush1.bf16.msra.mxu0 %v1388
      %1479 = vmatprep.subr.bf16.mxu0 %v1391
      %1480 = vmatpush1.bf16.msra.mxu0 %v1390
      %1481 = vmatprep.subr.bf16.mxu0 %v1393
      %1482 = vmatpush1.bf16.msra.mxu0 %v1392
      %1483 = vmatprep.subr.bf16.mxu0 %v1395
      %1484 = vmatpush1.bf16.msra.mxu0 %v1394
      %1485 = vmatprep.subr.bf16.mxu0 %v1397
      %1486 = vmatpush1.bf16.msra.mxu0 %v1396
      %1487 = vmatprep.subr.bf16.mxu0 %v1399
      %1488 = vmatpush1.bf16.msra.mxu0 %v1398
      %1489 = vmatprep.subr.bf16.mxu0 %v1401
      %1490 = vmatpush1.bf16.msra.mxu0 %v1400
      %1491 = vmatprep.subr.bf16.mxu0 %v1403
      %1492 = vmatpush1.bf16.msra.mxu0 %v1402
      %1493 = vmatprep.subr.bf16.mxu0 %v1405
      %1494 = vmatpush1.bf16.msra.mxu0 %v1404
      %1495 = vmatprep.subr.bf16.mxu0 %v1407
      %1496 = vmatpush1.bf16.msra.mxu0 %v1406
      %1497 = vmatprep.subr.bf16.mxu0 %v1409
      %1498 = vmatpush1.bf16.msra.mxu0 %v1408
      %1499 = vmatprep.subr.bf16.mxu0 %v1411
      %1500 = vmatpush1.bf16.msra.mxu0 %v1410
      %1501 = vmatprep.subr.bf16.mxu0 %v1413
      %1502 = vmatpush1.bf16.msra.mxu0 %v1412
      %1503 = vmatprep.subr.bf16.mxu0 %v1415
      %1504 = vmatpush1.bf16.msra.mxu0 %v1414
      %1505 = vmatprep.subr.bf16.mxu0 %v1417
      %1506 = vmatpush1.bf16.msra.mxu0 %v1416
      %1507 = vmatprep.subr.bf16.mxu0 %v1419
      %1508 = vmatpush1.bf16.msra.mxu0 %v1418
      %1509 = vmatprep.mubr.bf16.mxu0 %v1457
      %1510 = vmatmul.mubr.bf16.gmra.mrb[0].mxu0 %v1456
      %v1511 = vpop.f32.mrb[0].mxu0
      %v1512 = vadd.f32 0.0, %v1511
      %v1513 = vpop.f32.mrb[0].mxu0
      %v1514 = vadd.f32 0.0, %v1513
      %v1515 = vpop.f32.mrb[0].mxu0
      %v1516 = vadd.f32 0.0, %v1515
      %v1517 = vpop.f32.mrb[0].mxu0
      %v1518 = vadd.f32 0.0, %v1517
      %1519 = vmatprep.mubr.bf16.mxu0 %v1461
      %1520 = vmatmul.mubr.bf16.gmra.mrb[0].mxu0 %v1460
      %v1521 = vpop.f32.mrb[0].mxu0
      %v1522 = vadd.f32 0.0, %v1521
      %v1523 = vpop.f32.mrb[0].mxu0
      %v1524 = vadd.f32 0.0, %v1523
      %v1525 = vpop.f32.mrb[0].mxu0
      %v1526 = vpop.f32.mrb[0].mxu0
      %1527 = vdwg.mxu0
      %1528 = vmatprep.subr.bf16.mxu0 %v1421
      %1529 = vmatpush1.bf16.msra.mxu0 %v1420
      %1530 = vmatprep.subr.bf16.mxu0 %v1423
      %1531 = vmatpush1.bf16.msra.mxu0 %v1422
      %1532 = vmatprep.subr.bf16.mxu0 %v1425
      %1533 = vmatpush1.bf16.msra.mxu0 %v1424
      %1534 = vmatprep.subr.bf16.mxu0 %v1427
      %1535 = vmatpush1.bf16.msra.mxu0 %v1426
      %1536 = vmatprep.subr.bf16.mxu0 %v1429
      %1537 = vmatpush1.bf16.msra.mxu0 %v1428
      %1538 = vmatprep.subr.bf16.mxu0 %v1431
      %1539 = vmatpush1.bf16.msra.mxu0 %v1430
      %1540 = vmatprep.subr.bf16.mxu0 %v1433
      %1541 = vmatpush1.bf16.msra.mxu0 %v1432
      %1542 = vmatprep.subr.bf16.mxu0 %v1435
      %1543 = vmatpush1.bf16.msra.mxu0 %v1434
      %1544 = vmatprep.subr.bf16.mxu0 %v1437
      %1545 = vmatpush1.bf16.msra.mxu0 %v1436
      %1546 = vmatprep.subr.bf16.mxu0 0
      %1547 = vmatpush1.bf16.msra.mxu0 0
      %1548 = vmatprep.subr.bf16.mxu0 0
      %1549 = vmatpush1.bf16.msra.mxu0 0
      %1550 = vmatprep.subr.bf16.mxu0 0
      %1551 = vmatpush1.bf16.msra.mxu0 0
      %1552 = vmatprep.subr.bf16.mxu0 0
      %1553 = vmatpush1.bf16.msra.mxu0 0
      %1554 = vmatprep.subr.bf16.mxu0 0
      %1555 = vmatpush1.bf16.msra.mxu0 0
      %1556 = vmatprep.subr.bf16.mxu0 0
      %1557 = vmatpush1.bf16.msra.mxu0 0
      %1558 = vmatprep.subr.bf16.mxu0 0
      %1559 = vmatpush1.bf16.msra.mxu0 0
      %1560 = vmatprep.mubr.bf16.mxu0 %v1472
      %1561 = vmatmul.mubr.bf16.gmra.mrb[0].mxu0 %v1458
      %v1562 = vpop.f32.mrb[0].mxu0
      %v1563 = vadd.f32 %v1512, %v1562
      %v1564 = vpop.f32.mrb[0].mxu0
      %v1565 = vadd.f32 %v1514, %v1564
      %v1566 = vpop.f32.mrb[0].mxu0
      %v1567 = vadd.f32 %v1516, %v1566
      %v1568 = vpop.f32.mrb[0].mxu0
      %v1569 = vadd.f32 %v1518, %v1568
      %1570 = vmatprep.mubr.bf16.mxu0 %v1475
      %1571 = vmatmul.mubr.bf16.gmra.mrb[0].mxu0 %v1462
      %v1572 = vpop.f32.mrb[0].mxu0
      %v1573 = vadd.f32 %v1522, %v1572
      %v1574 = vpop.f32.mrb[0].mxu0
      %v1575 = vadd.f32 %v1524, %v1574
      %v1576 = vpop.f32.mrb[0].mxu0
      %v1577 = vpop.f32.mrb[0].mxu0
      %1578 = vdwg.mxu0
      %v1579 = vmax.f32 %v1563, 0.0
      %v1580 = vmax.f32 %v1565, 0.0
      %v1581 = vmax.f32 %v1567, 0.0
      %v1582 = vmax.f32 %v1569, 0.0
      %v1583 = vmax.f32 %v1573, 0.0
      %v1584 = vmax.f32 %v1575, 0.0
      %v1585 = vld [vmem:[%s5] sm:$0xff]
      %v1586 = vld [vmem:[%s5 + $0x8] sm:$0xff]
      %v1587 = vld [vmem:[%s5 + $0x10] sm:$0xff]
      %1589 = vset.pattern.permute.xlu0 0
      %1590 = vperm.xlu0 %1589, %v1585
      %v1591 = vpop.permute.xlu0 %1590
      %1594 = vset.pattern.permute.xlu0 0
      %1595 = vperm.xlu0 %1594, %v1586
      %v1596 = vpop.permute.xlu0 %1595
      %1599 = vset.pattern.permute.xlu0 0
      %1600 = vperm.xlu0 %1599, %v1587
      %v1601 = vpop.permute.xlu0 %1600
      %v1603 = vmul.f32 %v1579, %v1591
      %v1604 = vmul.f32 %v1580, %v1591
      %v1605 = vmul.f32 %v1581, %v1596
      %v1606 = vmul.f32 %v1582, %v1596
      %v1607 = vmul.f32 %v1583, %v1601
      %v1608 = vmul.f32 %v1584, %v1601
      %v1609 = vadd.f32 %v1603, %v1605
      %v1610 = vadd.f32 %v1604, %v1606
      %v1611 = vadd.f32 %v1609, %v1607
      %v1612 = vadd.f32 %v1610, %v1608
      %1613 = vrot.lane.b32.xlu0 %v1611, 34
      %v1614 = vpop.permute.xlu0 %1613
      %1615 = vrot.lane.b32.xlu0 %v1612, 34
      %v1616 = vpop.permute.xlu0 %1615
      %v1617 = vsel %vm394, %v1614, %v1616
      %v1618 = vsel %vm394, %v1616, %v1614
      %v1619 = vmul.f32 %v1618, %v401
      %v1620 = vmul.f32 %v1617, %v405
      %1621 = vrot.lane.b32.xlu0 %v1611, 33
      %v1622 = vpop.permute.xlu0 %1621
      %1623 = vrot.lane.b32.xlu0 %v1612, 33
      %v1624 = vpop.permute.xlu0 %1623
      %v1625 = vsel %vm414, %v1622, %v1624
      %v1626 = vsel %vm414, %v1624, %v1622
      %v1627 = vmul.f32 %v1626, %v421
      %v1628 = vmul.f32 %v1625, %v425
      %1629 = vrot.lane.b32.xlu0 %v1611, 32
      %v1630 = vpop.permute.xlu0 %1629
      %1631 = vrot.lane.b32.xlu0 %v1612, 32
      %v1632 = vpop.permute.xlu0 %1631
      %v1633 = vsel %vm434, %v1630, %v1632
      %v1634 = vsel %vm434, %v1632, %v1630
      %v1635 = vmul.f32 %v1634, %v441
      %v1636 = vmul.f32 %v1633, %v445
      %1637 = vrot.lane.b32.xlu0 %v1611, 31
      %v1638 = vpop.permute.xlu0 %1637
      %1639 = vrot.lane.b32.xlu0 %v1612, 31
      %v1640 = vpop.permute.xlu0 %1639
      %v1641 = vsel %vm454, %v1638, %v1640
      %v1642 = vsel %vm454, %v1640, %v1638
      %v1643 = vmul.f32 %v1642, %v461
      %v1644 = vmul.f32 %v1641, %v465
      %1645 = vrot.lane.b32.xlu0 %v1611, 30
      %v1646 = vpop.permute.xlu0 %1645
      %1647 = vrot.lane.b32.xlu0 %v1612, 30
      %v1648 = vpop.permute.xlu0 %1647
      %v1649 = vsel %vm474, %v1646, %v1648
      %v1650 = vsel %vm474, %v1648, %v1646
      %v1651 = vmul.f32 %v1650, %v481
      %v1652 = vmul.f32 %v1649, %v485
      %1653 = vrot.lane.b32.xlu0 %v1611, 18
      %v1654 = vpop.permute.xlu0 %1653
      %1655 = vrot.lane.b32.xlu0 %v1612, 18
      %v1656 = vpop.permute.xlu0 %1655
      %v1657 = vsel %vm494, %v1654, %v1656
      %v1658 = vsel %vm494, %v1656, %v1654
      %v1659 = vmul.f32 %v1658, %v501
      %v1660 = vmul.f32 %v1657, %v505
      %1661 = vrot.lane.b32.xlu0 %v1611, 17
      %v1662 = vpop.permute.xlu0 %1661
      %1663 = vrot.lane.b32.xlu0 %v1612, 17
      %v1664 = vpop.permute.xlu0 %1663
      %v1665 = vsel %vm514, %v1662, %v1664
      %v1666 = vsel %vm514, %v1664, %v1662
      %v1667 = vmul.f32 %v1666, %v521
      %v1668 = vmul.f32 %v1665, %v525
      %1669 = vrot.lane.b32.xlu0 %v1611, 16
      %v1670 = vpop.permute.xlu0 %1669
      %1671 = vrot.lane.b32.xlu0 %v1612, 16
      %v1672 = vpop.permute.xlu0 %1671
      %v1673 = vsel %vm534, %v1670, %v1672
      %v1674 = vsel %vm534, %v1672, %v1670
      %v1675 = vmul.f32 %v1674, %v541
      %v1676 = vmul.f32 %v1673, %v545
      %1677 = vrot.lane.b32.xlu0 %v1611, 15
      %v1678 = vpop.permute.xlu0 %1677
      %1679 = vrot.lane.b32.xlu0 %v1612, 15
      %v1680 = vpop.permute.xlu0 %1679
      %v1681 = vsel %vm554, %v1678, %v1680
      %v1682 = vsel %vm554, %v1680, %v1678
      %v1683 = vmul.f32 %v1682, %v561
      %v1684 = vmul.f32 %v1681, %v565
      %1685 = vrot.lane.b32.xlu0 %v1611, 14
      %v1686 = vpop.permute.xlu0 %1685
      %1687 = vrot.lane.b32.xlu0 %v1612, 14
      %v1688 = vpop.permute.xlu0 %1687
      %v1689 = vsel %vm574, %v1686, %v1688
      %v1690 = vsel %vm574, %v1688, %v1686
      %v1691 = vmul.f32 %v1690, %v581
      %v1692 = vmul.f32 %v1689, %v585
      %1693 = vrot.lane.b32.xlu0 %v1611, 2
      %v1694 = vpop.permute.xlu0 %1693
      %1695 = vrot.lane.b32.xlu0 %v1612, 2
      %v1696 = vpop.permute.xlu0 %1695
      %v1697 = vsel %vm594, %v1694, %v1696
      %v1698 = vsel %vm594, %v1696, %v1694
      %v1699 = vmul.f32 %v1698, %v601
      %v1700 = vmul.f32 %v1697, %v605
      %1701 = vrot.lane.b32.xlu0 %v1611, 1
      %v1702 = vpop.permute.xlu0 %1701
      %1703 = vrot.lane.b32.xlu0 %v1612, 1
      %v1704 = vpop.permute.xlu0 %1703
      %v1705 = vsel %vm614, %v1702, %v1704
      %v1706 = vsel %vm614, %v1704, %v1702
      %v1707 = vmul.f32 %v1706, %v621
      %v1708 = vmul.f32 %v1705, %v625
      %v1709 = vmul.f32 %v1611, %v634
      %v1710 = vmul.f32 %v1612, %v638
      %1711 = vrot.lane.b32.xlu0 %v1611, 127
      %v1712 = vpop.permute.xlu0 %1711
      %1713 = vrot.lane.b32.xlu0 %v1612, 127
      %v1714 = vpop.permute.xlu0 %1713
      %v1715 = vsel %vm647, %v1712, %v1714
      %v1716 = vsel %vm647, %v1714, %v1712
      %v1717 = vmul.f32 %v1715, %v654
      %v1718 = vmul.f32 %v1716, %v658
      %1719 = vrot.lane.b32.xlu0 %v1611, 126
      %v1720 = vpop.permute.xlu0 %1719
      %1721 = vrot.lane.b32.xlu0 %v1612, 126
      %v1722 = vpop.permute.xlu0 %1721
      %v1723 = vsel %vm667, %v1720, %v1722
      %v1724 = vsel %vm667, %v1722, %v1720
      %v1725 = vmul.f32 %v1723, %v674
      %v1726 = vmul.f32 %v1724, %v678
      %1727 = vrot.lane.b32.xlu0 %v1611, 114
      %v1728 = vpop.permute.xlu0 %1727
      %1729 = vrot.lane.b32.xlu0 %v1612, 114
      %v1730 = vpop.permute.xlu0 %1729
      %v1731 = vsel %vm687, %v1728, %v1730
      %v1732 = vsel %vm687, %v1730, %v1728
      %v1733 = vmul.f32 %v1731, %v694
      %v1734 = vmul.f32 %v1732, %v698
      %1735 = vrot.lane.b32.xlu0 %v1611, 113
      %v1736 = vpop.permute.xlu0 %1735
      %1737 = vrot.lane.b32.xlu0 %v1612, 113
      %v1738 = vpop.permute.xlu0 %1737
      %v1739 = vsel %vm707, %v1736, %v1738
      %v1740 = vsel %vm707, %v1738, %v1736
      %v1741 = vmul.f32 %v1739, %v714
      %v1742 = vmul.f32 %v1740, %v718
      %1743 = vrot.lane.b32.xlu0 %v1611, 112
      %v1744 = vpop.permute.xlu0 %1743
      %1745 = vrot.lane.b32.xlu0 %v1612, 112
      %v1746 = vpop.permute.xlu0 %1745
      %v1747 = vsel %vm727, %v1744, %v1746
      %v1748 = vsel %vm727, %v1746, %v1744
      %v1749 = vmul.f32 %v1747, %v734
      %v1750 = vmul.f32 %v1748, %v738
      %1751 = vrot.lane.b32.xlu0 %v1611, 111
      %v1752 = vpop.permute.xlu0 %1751
      %1753 = vrot.lane.b32.xlu0 %v1612, 111
      %v1754 = vpop.permute.xlu0 %1753
      %v1755 = vsel %vm747, %v1752, %v1754
      %v1756 = vsel %vm747, %v1754, %v1752
      %v1757 = vmul.f32 %v1755, %v754
      %v1758 = vmul.f32 %v1756, %v758
      %1759 = vrot.lane.b32.xlu0 %v1611, 110
      %v1760 = vpop.permute.xlu0 %1759
      %1761 = vrot.lane.b32.xlu0 %v1612, 110
      %v1762 = vpop.permute.xlu0 %1761
      %v1763 = vsel %vm767, %v1760, %v1762
      %v1764 = vsel %vm767, %v1762, %v1760
      %v1765 = vmul.f32 %v1763, %v774
      %v1766 = vmul.f32 %v1764, %v778
      %1767 = vrot.lane.b32.xlu0 %v1611, 98
      %v1768 = vpop.permute.xlu0 %1767
      %1769 = vrot.lane.b32.xlu0 %v1612, 98
      %v1770 = vpop.permute.xlu0 %1769
      %v1771 = vsel %vm787, %v1768, %v1770
      %v1772 = vsel %vm787, %v1770, %v1768
      %v1773 = vmul.f32 %v1771, %v794
      %v1774 = vmul.f32 %v1772, %v798
      %1775 = vrot.lane.b32.xlu0 %v1611, 97
      %v1776 = vpop.permute.xlu0 %1775
      %1777 = vrot.lane.b32.xlu0 %v1612, 97
      %v1778 = vpop.permute.xlu0 %1777
      %v1779 = vsel %vm807, %v1776, %v1778
      %v1780 = vsel %vm807, %v1778, %v1776
      %v1781 = vmul.f32 %v1779, %v814
      %v1782 = vmul.f32 %v1780, %v818
      %1783 = vrot.lane.b32.xlu0 %v1611, 96
      %v1784 = vpop.permute.xlu0 %1783
      %1785 = vrot.lane.b32.xlu0 %v1612, 96
      %v1786 = vpop.permute.xlu0 %1785
      %v1787 = vsel %vm827, %v1784, %v1786
      %v1788 = vsel %vm827, %v1786, %v1784
      %v1789 = vmul.f32 %v1787, %v834
      %v1790 = vmul.f32 %v1788, %v838
      %1791 = vrot.lane.b32.xlu0 %v1611, 95
      %v1792 = vpop.permute.xlu0 %1791
      %1793 = vrot.lane.b32.xlu0 %v1612, 95
      %v1794 = vpop.permute.xlu0 %1793
      %v1795 = vsel %vm847, %v1792, %v1794
      %v1796 = vsel %vm847, %v1794, %v1792
      %v1797 = vmul.f32 %v1795, %v854
      %v1798 = vmul.f32 %v1796, %v858
      %1799 = vrot.lane.b32.xlu0 %v1611, 94
      %v1800 = vpop.permute.xlu0 %1799
      %1801 = vrot.lane.b32.xlu0 %v1612, 94
      %v1802 = vpop.permute.xlu0 %1801
      %v1803 = vsel %vm867, %v1800, %v1802
      %v1804 = vsel %vm867, %v1802, %v1800
      %v1805 = vmul.f32 %v1803, %v874
      %v1806 = vmul.f32 %v1804, %v878
      %v1807 = vld [vmem:[%s6] sm:$0xff]
      %v1808 = vld [vmem:[%s6 + $0x8] sm:$0xff]
      %v1809 = vld [vmem:[%s6 + $0x10] sm:$0xff]
      %v1810 = vpack.c.bf16 %v1627, %v1619
      %v1811 = vpack.c.bf16 %v1628, %v1620
      %v1812 = vpack.c.bf16 %v1643, %v1635
      %v1813 = vpack.c.bf16 %v1644, %v1636
      %v1814 = vpack.c.bf16 %v1659, %v1651
      %v1815 = vpack.c.bf16 %v1660, %v1652
      %v1816 = vpack.c.bf16 %v1675, %v1667
      %v1817 = vpack.c.bf16 %v1676, %v1668
      %v1818 = vpack.c.bf16 %v1691, %v1683
      %v1819 = vpack.c.bf16 %v1692, %v1684
      %v1820 = vpack.c.bf16 %v1707, %v1699
      %v1821 = vpack.c.bf16 %v1708, %v1700
      %v1822 = vpack.c.bf16 %v1717, %v1709
      %v1823 = vpack.c.bf16 %v1718, %v1710
      %v1824 = vpack.c.bf16 %v1733, %v1725
      %v1825 = vpack.c.bf16 %v1734, %v1726
      %v1826 = vpack.c.bf16 %v1749, %v1741
      %v1827 = vpack.c.bf16 %v1750, %v1742
      %v1828 = vpack.c.bf16 %v1765, %v1757
      %v1829 = vpack.c.bf16 %v1766, %v1758
      %v1830 = vpack.c.bf16 %v1781, %v1773
      %v1831 = vpack.c.bf16 %v1782, %v1774
      %v1832 = vpack.c.bf16 %v1797, %v1789
      %v1833 = vpack.c.bf16 %v1798, %v1790
      %v1834 = vpack.c.bf16 %v1805, %v1805
      %v1835 = vpack.c.bf16 %v1806, %v1806
      %v1839 = vunpack.c.l.b16 %v1807
      %v1840 = vunpack.c.h.b16 %v1807
      %v1841 = vunpack.c.l.b16 %v1808
      %v1842 = vunpack.c.h.b16 %v1808
      %v1843 = vunpack.c.l.b16 %v1809
      %v1844 = vunpack.c.h.b16 %v1809
      %v1845 = vpack.c.b16 %v1841, %v1839
      %v1846 = vpack.c.b16 %v1842, %v1840
      %v1847 = vpack.c.b16 %v1843, %v1843
      %v1848 = vpack.c.b16 %v1844, %v1844
      %v1852 = vsel %vm920, %v1846, 0
      %v1855 = vsel %vm920, %v1848, 0
      %v1858 = vsel %vm924, %v1834, 0
      %v1861 = vsel %vm924, %v1835, 0
      %1863 = vmatprep.subr.bf16.mxu0 %v1811
      %1864 = vmatpush1.bf16.msra.mxu0 %v1810
      %1865 = vmatprep.subr.bf16.mxu0 %v1813
      %1866 = vmatpush1.bf16.msra.mxu0 %v1812
      %1867 = vmatprep.subr.bf16.mxu0 %v1815
      %1868 = vmatpush1.bf16.msra.mxu0 %v1814
      %1869 = vmatprep.subr.bf16.mxu0 %v1817
      %1870 = vmatpush1.bf16.msra.mxu0 %v1816
      %1871 = vmatprep.subr.bf16.mxu0 %v1819
      %1872 = vmatpush1.bf16.msra.mxu0 %v1818
      %1873 = vmatprep.subr.bf16.mxu0 %v1821
      %1874 = vmatpush1.bf16.msra.mxu0 %v1820
      %1875 = vmatprep.subr.bf16.mxu0 %v1823
      %1876 = vmatpush1.bf16.msra.mxu0 %v1822
      %1877 = vmatprep.subr.bf16.mxu0 %v1825
      %1878 = vmatpush1.bf16.msra.mxu0 %v1824
      %1879 = vmatprep.subr.bf16.mxu0 %v1827
      %1880 = vmatpush1.bf16.msra.mxu0 %v1826
      %1881 = vmatprep.subr.bf16.mxu0 %v1829
      %1882 = vmatpush1.bf16.msra.mxu0 %v1828
      %1883 = vmatprep.subr.bf16.mxu0 %v1831
      %1884 = vmatpush1.bf16.msra.mxu0 %v1830
      %1885 = vmatprep.subr.bf16.mxu0 %v1833
      %1886 = vmatpush1.bf16.msra.mxu0 %v1832
      %1887 = vmatprep.subr.bf16.mxu0 %v1861
      %1888 = vmatpush1.bf16.msra.mxu0 %v1858
      %1889 = vmatprep.subr.bf16.mxu0 0
      %1890 = vmatpush1.bf16.msra.mxu0 0
      %1891 = vmatprep.subr.bf16.mxu0 0
      %1892 = vmatpush1.bf16.msra.mxu0 0
      %1893 = vmatprep.subr.bf16.mxu0 0
      %1894 = vmatpush1.bf16.msra.mxu0 0
      %1895 = vmatprep.mubr.bf16.mxu0 %v1852
      %1896 = vmatmul.mubr.bf16.gmra.mrb[0].mxu0 %v1845
      %v1897 = vpop.f32.mrb[0].mxu0
      %v1898 = vadd.f32 0.0, %v1897
      %v1899 = vpop.f32.mrb[0].mxu0
      %v1900 = vadd.f32 0.0, %v1899
      %v1901 = vpop.f32.mrb[0].mxu0
      %v1902 = vadd.f32 0.0, %v1901
      %v1903 = vpop.f32.mrb[0].mxu0
      %v1904 = vadd.f32 0.0, %v1903
      %1905 = vmatprep.mubr.bf16.mxu0 %v1855
      %1906 = vmatmul.mubr.bf16.gmra.mrb[0].mxu0 %v1847
      %v1907 = vpop.f32.mrb[0].mxu0
      %v1908 = vadd.f32 0.0, %v1907
      %v1909 = vpop.f32.mrb[0].mxu0
      %v1910 = vadd.f32 0.0, %v1909
      %v1911 = vpop.f32.mrb[0].mxu0
      %v1912 = vpop.f32.mrb[0].mxu0
      %1913 = vdwg.mxu0
      %v1914 = vmax.f32 %v1898, 0.0
      %v1915 = vmax.f32 %v1900, 0.0
      %v1916 = vmax.f32 %v1902, 0.0
      %v1917 = vmax.f32 %v1904, 0.0
      %v1918 = vmax.f32 %v1908, 0.0
      %v1919 = vmax.f32 %v1910, 0.0
      %v1920 = vld [vmem:[%s7] sm:$0xff]
      %v1921 = vld [vmem:[%s7 + $0x8] sm:$0xff]
      %v1922 = vld [vmem:[%s7 + $0x10] sm:$0xff]
      %1924 = vset.pattern.permute.xlu0 0
      %1925 = vperm.xlu0 %1924, %v1920
      %v1926 = vpop.permute.xlu0 %1925
      %1929 = vset.pattern.permute.xlu0 0
      %1930 = vperm.xlu0 %1929, %v1921
      %v1931 = vpop.permute.xlu0 %1930
      %1934 = vset.pattern.permute.xlu0 0
      %1935 = vperm.xlu0 %1934, %v1922
      %v1936 = vpop.permute.xlu0 %1935
      %v1938 = vmul.f32 %v1914, %v1926
      %v1939 = vmul.f32 %v1915, %v1926
      %v1940 = vmul.f32 %v1916, %v1931
      %v1941 = vmul.f32 %v1917, %v1931
      %v1942 = vmul.f32 %v1918, %v1936
      %v1943 = vmul.f32 %v1919, %v1936
      %v1944 = vadd.f32 %v1938, %v1940
      %v1945 = vadd.f32 %v1939, %v1941
      %v1946 = vadd.f32 %v1944, %v1942
      %v1947 = vadd.f32 %v1945, %v1943
      %v1948 = vld [vmem:[%s8] sm:$0xff]
      %v1949 = vld [vmem:[%s8 + $0x8] sm:$0x3]
      %vm1950 = vcmask 64512
      %v1952 = vsel %vm1950, %v1948, 0
      %v1955 = vsel %vm1950, %v1949, 0
      %1957 = vmatprep.subr.mxu0 %v1947
      %1958 = vmatpush1.msra.mxu0 %v1946
      %1959 = vmatprep.subr.mxu0 0.0
      %1960 = vmatpush1.msra.mxu0 0.0
      %1961 = vmatprep.subr.mxu0 0.0
      %1962 = vmatpush1.msra.mxu0 0.0
      %1963 = vmatprep.subr.mxu0 0.0
      %1964 = vmatpush1.msra.mxu0 0.0
      %1965 = vmatprep.subr.mxu0 0.0
      %1966 = vmatpush1.msra.mxu0 0.0
      %1967 = vmatprep.subr.mxu0 0.0
      %1968 = vmatpush1.msra.mxu0 0.0
      %1969 = vmatprep.subr.mxu0 0.0
      %1970 = vmatpush1.msra.mxu0 0.0
      %1971 = vmatprep.subr.mxu0 0.0
      %1972 = vmatpush1.msra.mxu0 0.0
      %1973 = vmatprep.subr.mxu0 0.0
      %1974 = vmatpush1.msra.mxu0 0.0
      %1975 = vmatprep.subr.mxu0 0.0
      %1976 = vmatpush1.msra.mxu0 0.0
      %1977 = vmatprep.subr.mxu0 0.0
      %1978 = vmatpush1.msra.mxu0 0.0
      %1979 = vmatprep.subr.mxu0 0.0
      %1980 = vmatpush1.msra.mxu0 0.0
      %1981 = vmatprep.subr.mxu0 0.0
      %1982 = vmatpush1.msra.mxu0 0.0
      %1983 = vmatprep.subr.mxu0 0.0
      %1984 = vmatpush1.msra.mxu0 0.0
      %1985 = vmatprep.subr.mxu0 0.0
      %1986 = vmatpush1.msra.mxu0 0.0
      %1987 = vmatprep.subr.mxu0 0.0
      %1988 = vmatpush1.msra.mxu0 0.0
      %1989 = vmatprep.subr.mxu0 0.0
      %1990 = vmatpush1.msra.mxu0 0.0
      %1991 = vmatprep.subr.mxu0 0.0
      %1992 = vmatpush1.msra.mxu0 0.0
      %1993 = vmatprep.subr.mxu0 0.0
      %1994 = vmatpush1.msra.mxu0 0.0
      %1995 = vmatprep.subr.mxu0 0.0
      %1996 = vmatpush1.msra.mxu0 0.0
      %1997 = vmatprep.subr.mxu0 0.0
      %1998 = vmatpush1.msra.mxu0 0.0
      %1999 = vmatprep.subr.mxu0 0.0
      %2000 = vmatpush1.msra.mxu0 0.0
      %2001 = vmatprep.subr.mxu0 0.0
      %2002 = vmatpush1.msra.mxu0 0.0
      %2003 = vmatprep.subr.mxu0 0.0
      %2004 = vmatpush1.msra.mxu0 0.0
      %2005 = vmatprep.subr.mxu0 0.0
      %2006 = vmatpush1.msra.mxu0 0.0
      %2007 = vmatprep.subr.mxu0 0.0
      %2008 = vmatpush1.msra.mxu0 0.0
      %2009 = vmatprep.subr.mxu0 0.0
      %2010 = vmatpush1.msra.mxu0 0.0
      %2011 = vmatprep.subr.mxu0 0.0
      %2012 = vmatpush1.msra.mxu0 0.0
      %2013 = vmatprep.subr.mxu0 0.0
      %2014 = vmatpush1.msra.mxu0 0.0
      %2015 = vmatprep.subr.mxu0 0.0
      %2016 = vmatpush1.msra.mxu0 0.0
      %2017 = vmatprep.subr.mxu0 0.0
      %2018 = vmatpush1.msra.mxu0 0.0
      %2019 = vmatprep.subr.mxu0 0.0
      %2020 = vmatpush1.msra.mxu0 0.0
      %2021 = vmatprep.mubr.f32.mxu0 0.0
      %2022 = vmatmul.mubr.f32.gmra.mrb[0].mxu0 %v1952
      %v2023 = vpop.f32.mrb[0].mxu0
      %v2024 = vadd.f32 0.0, %v2023
      %v2025 = vpop.f32.mrb[0].mxu0
      %v2026 = vadd.f32 0.0, %v2025
      %2027 = vmatprep.mubr.f32.mxu0 0.0
      %2028 = vmatmul.mubr.f32.gmra.mrb[0].mxu0 %v1955
      %v2029 = vpop.f32.mrb[0].mxu0
      %v2030 = vadd.f32 0.0, %v2029
      %v2031 = vpop.f32.mrb[0].mxu0
      %v2032 = vadd.f32 0.0, %v2031
      %2033 = vdwg.mxu0
      %v2034 = vadd.f32 %v2024, %v2026
      %2035 = vadd.xlane.f32.xlu0 %v2034
      %v2036 = vpop.xlane.xlu0 %2035
      %vm2037 = vcmask 1041408
      %v2038 = vsel %vm2037, %v2030, 0.0
      %v2039 = vsel %vm2037, %v2032, 0.0
      %v2040 = vadd.f32 %v2038, %v2039
      %2041 = vadd.xlane.f32.xlu0 %v2040
      %v2042 = vpop.xlane.xlu0 %2041
      %v2043 = vrcp.pop 256.0
      %v2044 = vmul.f32 %v2036, %v2043
      %v2045 = vmul.f32 %v2042, %v2043
      %v2046 = vld [vmem:[%s9] sm:$0xff]
      %v2047 = vld [vmem:[%s9 + $0x8] sm:$0x3]
      %v2048 = vadd.f32 %v2044, %v2046
      %v2049 = vadd.f32 %v2045, %v2047
      %vm2050 = vcmask 7168
      %2051 = vst.msk [vmem:[%s359] sm:$0xff] %vm2050, %v2048
      %vm2052 = vcmask 1024
      %2053 = vst.msk [vmem:[%s359 + $0x8] sm:$0x3] %vm2052, %v2049
      %p2054 = scmp.lt.s32.totalorder %s21, 1
      %s2055 = scalar_select %p2054, %s21, 1
      %s2056 = smul.addr %s2055, 2
      %s2057 = smul.addr %s2056, 8
      %s2058 = scalar_lea.vmem %s10, %s2057
      // Predicated region
      $region61: #{network_forward.1} parent=59 // pred_check
        %p2059 = pneg %p254
      $region62: #{network_forward.1} parent=59 // pred_check_branch
        %2061 = sbr.rel (%p2059) target = $region64
      $region63: #{network_forward.1} parent=59 // pred_region
        _
      $region64: #{network_forward.1} parent=59 // pred_fallthru
        _
    $region60: #{network_forward.1} parent=5 // pred_fallthru
      _
    %p2062 = scmp.le.s32.totalorder 2, %s16
    // Predicated region
    $region65: #{network_forward.1} parent=5 // pred_check
      %p2063 = pneg %p2062
    $region66: #{network_forward.1} parent=5 // pred_check_branch
      %2065 = sbr.rel (%p2063) target = $region68
    $region67: #{network_forward.1} parent=5 // pred_region
      %s2066 = ssub.s32 %s16, 2
      // Predicated region
      $region69: #{network_forward.1} parent=67 // pred_check
        %p2067 = pneg %p260
      $region70: #{network_forward.1} parent=67 // pred_check_branch
        %2069 = sbr.rel (%p2067) target = $region72
      $region71: #{network_forward.1} parent=67 // pred_region
        %p2070 = scmp.lt.s32.totalorder %s22, 1
        %s2071 = scalar_select %p2070, %s22, 1
        %s2072 = smul.addr %s2071, 2
        %s2073 = smul.addr %s2072, 8
        %s2074 = scalar_lea.vmem %s10, %s2073
      $region72: #{network_forward.1} parent=67 // pred_fallthru
        _
    $region68: #{network_forward.1} parent=5 // pred_fallthru
      _
  $region6: #{network_forward.1} parent=0 // loop_footer
    %s20 = sadd.s32 1, %s16
  $region7: #{network_forward.1} parent=0 // loop_footer_branch
    %15 = sbr.rel target = $region3
  $region8: #{network_forward.1} parent=0 // loop_exit
    _

</llo_original>
